<compile_context>
chip_gen: v7x
topology: tpu7x:2x2x1
jax: 0.10.0
libtpu: 0.0.40
codegen_flags: <defaults>
</compile_context>

<pallas_src>
from functools import partial

import jax
import jax.numpy as jnp
from jax.experimental import pallas as pl
from jax.experimental.pallas import tpu as pltpu


def _round_up(n, m):
    return ((n + m - 1) // m) * m


# ---------------------------------------------------------------------------
# Fused kernel: per (batch_block, time_block) grid step
#   1) block input projection  gx = x_blk @ W_ih^T + bias   (off serial chain)
#   2) unrolled recurrence over the block's timesteps       (serial chain)
# ---------------------------------------------------------------------------
def _lstm_fused_kernel(x_ref, wih_ref, whh_ref, b_ref, out_ref,
                       gx_ref, h_scr, c_scr, *, unroll):
    # x_ref:   (T_BLK, B_BLK, Dp)     time-major input block (compute dtype)
    # wih_ref: (Dp, 4Hp)              W_ih^T, gate-padded (VMEM resident)
    # whh_ref: (Hp, 4Hp)              W_hh^T, gate-padded (VMEM resident)
    # b_ref:   (1, 4Hp)   f32         b_ih + b_hh, gate-padded (VMEM resident)
    # out_ref: (T_BLK, B_BLK, Hp)     h_t outputs for this block
    # gx_ref:  (T_BLK*B_BLK, 4Hp) f32 scratch: block input projection
    # h_scr:   (B_BLK, Hp) f32        hidden carry across time blocks
    # c_scr:   (B_BLK, Hp) f32        cell carry across time blocks
    ti = pl.program_id(1)                    # time-block index (sequential)
    t_blk, b_blk, dp = x_ref.shape
    hp = h_scr.shape[-1]

    @pl.when(ti == 0)
    def _():
        h_scr[...] = jnp.zeros_like(h_scr)
        c_scr[...] = jnp.zeros_like(c_scr)

    # --- one big lane-dense GEMM for the whole block (not on the serial chain)
    xb = x_ref[...].reshape(t_blk * b_blk, dp)      # layout-preserving merge
    gx_ref[...] = (
        jnp.dot(xb, wih_ref[...], preferred_element_type=jnp.float32)
        + b_ref[...]
    )

    whh = whh_ref[...]                              # load once per block

    def step(t, carry):
        h, c = carry                                # f32 carries
        r0 = pl.multiple_of(t * b_blk, b_blk)       # aligned sublane offset
        gates = gx_ref[pl.ds(r0, b_blk), :] + jnp.dot(
            h.astype(whh.dtype), whh, preferred_element_type=jnp.float32)
        # PyTorch gate order [i, f, g, o]; slices are 128-lane aligned.
        i_g = jax.nn.sigmoid(gates[:, 0 * hp:1 * hp])
        f_g = jax.nn.sigmoid(gates[:, 1 * hp:2 * hp])
        g_g = jnp.tanh(gates[:, 2 * hp:3 * hp])
        o_g = jax.nn.sigmoid(gates[:, 3 * hp:4 * hp])
        c_new = f_g * c + i_g * g_g
        h_new = o_g * jnp.tanh(c_new)
        out_ref[t] = h_new.astype(out_ref.dtype)
        return h_new, c_new

    h, c = jax.lax.fori_loop(0, t_blk, step, (h_scr[...], c_scr[...]),
                             unroll=unroll)
    h_scr[...] = h
    c_scr[...] = c


# ---------------------------------------------------------------------------
# Wrapper
# ---------------------------------------------------------------------------
def _pack_gate_weight(w, H, Hp, Kp, dtype):
    """w: (4H, K) torch [i,f,g,o] layout -> (Kp, 4Hp) transposed, zero-padded."""
    K = w.shape[1]
    w4 = w.reshape(4, H, K)
    w4 = jnp.pad(w4, ((0, 0), (0, Hp - H), (0, Kp - K)))       # (4, Hp, Kp)
    return jnp.transpose(w4, (2, 0, 1)).reshape(Kp, 4 * Hp).astype(dtype)


def lstm_forward(x, w_ih, w_hh, b_ih, b_hh, *, t_block=None, batch_block=None,
                 compute_dtype=None):
    """x: (B, T, D) batch_first. Returns out: (B, T, H) with H == D."""
    B, T, D = x.shape
    H = w_hh.shape[1]
    assert w_ih.shape == (4 * H, D) and w_hh.shape == (4 * H, H)

    out_dtype = x.dtype
    if compute_dtype is None:
        compute_dtype = x.dtype                 # MXU operand dtype (bf16 for v6e+)
    csz = jnp.dtype(compute_dtype).itemsize
    sub = 8 * max(1, 4 // csz)                  # sublane tile: 8 (f32) / 16 (bf16)

    Bp = _round_up(B, sub)                      # sublane-aligned batch
    Hp = _round_up(H, 128)                      # lane-dense gates / output
    Dp = _round_up(D, 128)                      # lane-dense contraction dim

    if t_block is None:
        t_block = max(1, min(64, T))            # bigger blocks amortize overhead
    Tp = _round_up(T, t_block)
    n_tblk = Tp // t_block

    if batch_block is None:
        batch_block = Bp
    batch_block = _round_up(min(batch_block, Bp), sub)
    Bp = _round_up(Bp, batch_block)
    n_bblk = Bp // batch_block

    # Unroll cap (avoid spilling the 64-vreg file at large Hp).
    unroll = min(t_block, 8 if Hp < 512 else 4)

    # Time-major, padded input in the compute dtype (one fused XLA pass).
    x_tm = jnp.transpose(x, (1, 0, 2))                                  # (T,B,D)
    x_tm = jnp.pad(x_tm, ((0, Tp - T), (0, Bp - B), (0, Dp - D)))
    x_tm = x_tm.astype(compute_dtype)                                   # (Tp,Bp,Dp)

    # Gate-padded, transposed parameters.
    wih_p = _pack_gate_weight(w_ih, H, Hp, Dp, compute_dtype)           # (Dp,4Hp)
    whh_p = _pack_gate_weight(w_hh, H, Hp, Hp, compute_dtype)           # (Hp,4Hp)
    bias_p = jnp.pad((b_ih + b_hh).reshape(4, H),
                     ((0, 0), (0, Hp - H))).reshape(1, 4 * Hp)
    bias_p = bias_p.astype(jnp.float32)                                 # (1, 4Hp)

    # Explicit VMEM budget (double-buffered x/out/weights + scratch).
    osz = jnp.dtype(out_dtype).itemsize
    est = (2 * t_block * batch_block * Dp * csz
           + 2 * t_block * batch_block * Hp * osz
           + 2 * (Dp + Hp) * 4 * Hp * csz
           + 2 * 4 * Hp * 4
           + t_block * batch_block * 4 * Hp * 4
           + 2 * batch_block * Hp * 4)
    vmem_limit = int(min(100 * 2**20, max(32 * 2**20, int(1.5 * est))))

    out_tm = pl.pallas_call(
        partial(_lstm_fused_kernel, unroll=unroll),
        out_shape=jax.ShapeDtypeStruct((Tp, Bp, Hp), out_dtype),
        grid_spec=pltpu.PrefetchScalarGridSpec(
            num_scalar_prefetch=0,
            grid=(n_bblk, n_tblk),                       # batch blocks x time blocks
            in_specs=[
                pl.BlockSpec((t_block, batch_block, Dp),
                             lambda bi, ti: (ti, bi, 0)),        # x block
                pl.BlockSpec((Dp, 4 * Hp), lambda bi, ti: (0, 0)),  # W_ih^T resident
                pl.BlockSpec((Hp, 4 * Hp), lambda bi, ti: (0, 0)),  # W_hh^T resident
                pl.BlockSpec((1, 4 * Hp), lambda bi, ti: (0, 0)),   # bias resident
            ],
            out_specs=pl.BlockSpec((t_block, batch_block, Hp),
                                   lambda bi, ti: (ti, bi, 0)),
            scratch_shapes=[
                pltpu.VMEM((t_block * batch_block, 4 * Hp), jnp.float32),  # gx
                pltpu.VMEM((batch_block, Hp), jnp.float32),                # h carry
                pltpu.VMEM((batch_block, Hp), jnp.float32),                # c carry
            ],
        ),
        compiler_params=pltpu.CompilerParams(
            # batch blocks are independent (megacore-shardable on v7x);
            # the time axis carries state -> arbitrary (sequential).
            dimension_semantics=("parallel", "arbitrary"),
            vmem_limit_bytes=vmem_limit,
        ),
    )(x_tm, wih_p, whh_p, bias_p)

    # Un-pad + back to batch_first (single fused slice+transpose pass).
    return jnp.transpose(out_tm[:T, :B, :H], (1, 0, 2)).astype(out_dtype)


# ---------------------------------------------------------------------------
# Pure-JAX reference (lax.scan) mirroring torch.nn.LSTM forward
# ---------------------------------------------------------------------------
def lstm_reference(x, w_ih, w_hh, b_ih, b_hh):
    B, T, D = x.shape
    H = w_hh.shape[1]
    bias = b_ih + b_hh

    def step(carry, x_t):
        h, c = carry
        gates = x_t @ w_ih.T + h @ w_hh.T + bias
        i = jax.nn.sigmoid(gates[:, 0 * H:1 * H])
        f = jax.nn.sigmoid(gates[:, 1 * H:2 * H])
        g = jnp.tanh(gates[:, 2 * H:3 * H])
        o = jax.nn.sigmoid(gates[:, 3 * H:4 * H])
        c_new = f * c + i * g
        h_new = o * jnp.tanh(c_new)
        return (h_new, c_new), h_new

    init = (jnp.zeros((B, H), x.dtype), jnp.zeros((B, H), x.dtype))
    _, ys = jax.lax.scan(step, init, jnp.transpose(x, (1, 0, 2)))
    return jnp.transpose(ys, (1, 0, 2))


if __name__ == "__main__":
    root_key = jax.random.PRNGKey(0)

    def make_inputs(key, B, T, D, H):
        kx, k1, k2, k3, k4 = jax.random.split(key, 5)
        bound = 1.0 / jnp.sqrt(jnp.float32(H))
        x = jax.random.normal(kx, (B, T, D), dtype=jnp.float32)
        w_ih = jax.random.uniform(k1, (4 * H, D), jnp.float32, -bound, bound)
        w_hh = jax.random.uniform(k2, (4 * H, H), jnp.float32, -bound, bound)
        b_ih = jax.random.uniform(k3, (4 * H,), jnp.float32, -bound, bound)
        b_hh = jax.random.uniform(k4, (4 * H,), jnp.float32, -bound, bound)
        return x, w_ih, w_hh, b_ih, b_hh

    key_a, key_b = jax.random.split(root_key)

    # --- Test 1: module shapes (batch=2, seq=8, input_dim=hidden=32), f32 ----
    B, T, D = 2, 8, 32
    H = D
    args = make_inputs(key_a, B, T, D, H)
    out = jax.block_until_ready(jax.jit(lstm_forward)(*args))
    ref = lstm_reference(*args)
    assert out.shape == (B, T, H), out.shape
    assert jnp.allclose(out, ref, atol=1e-4, rtol=1e-4), "f32 mismatch"

    # --- Test 2: multi time-block + multi batch-block carry path, f32 --------
    B2, T2, D2 = 9, 40, 48
    H2 = D2
    args2 = make_inputs(key_b, B2, T2, D2, H2)
    f2 = jax.jit(lambda *a: lstm_forward(*a, t_block=16, batch_block=8))
    out2 = jax.block_until_ready(f2(*args2))
    ref2 = lstm_reference(*args2)
    assert out2.shape == (B2, T2, H2), out2.shape
    assert jnp.allclose(out2, ref2, atol=1e-4, rtol=1e-4), "blocked f32 mismatch"

    # --- Test 3: bf16 MXU operands, f32 accumulation / carries ---------------
    f3 = jax.jit(lambda *a: lstm_forward(*a, compute_dtype=jnp.bfloat16))
    out3 = jax.block_until_ready(f3(*args))
    assert jnp.allclose(out3, ref, atol=5e-2, rtol=5e-2), "bf16 mismatch"

    print("KERNEL_OK")
</pallas_src>

<mosaic_0001>
module attributes {stable_mosaic.version = 11 : i64} {
  func.func @_lstm_fused_kernel(%arg0: i32, %arg1: i32, %arg2: memref<8x8x128xf32, #tpu.memory_space<vmem>>, %arg3: memref<128x512xf32, #tpu.memory_space<vmem>>, %arg4: memref<128x512xf32, #tpu.memory_space<vmem>>, %arg5: memref<1x512xf32, #tpu.memory_space<vmem>>, %arg6: memref<8x8x128xf32, #tpu.memory_space<vmem>>, %arg7: memref<64x512xf32, #tpu.memory_space<vmem>>, %arg8: memref<8x128xf32, #tpu.memory_space<vmem>>, %arg9: memref<8x128xf32, #tpu.memory_space<vmem>>) attributes {dimension_semantics = [#tpu.dimension_semantics<parallel>, #tpu.dimension_semantics<arbitrary>], iteration_bounds = array<i64: 1, 1>, scalar_prefetch = 0 : i64, scratch_operands = 3 : i64, tpu.core_type = #tpu.core_type<tc>, window_params = [{transform_indices = @transform_0, window_bounds = array<i64: 8, 8, 128>}, {pipeline_mode = #tpu.pipeline_mode<synchronous>, transform_indices = @transform_1, window_bounds = array<i64: 128, 512>}, {pipeline_mode = #tpu.pipeline_mode<synchronous>, transform_indices = @transform_2, window_bounds = array<i64: 128, 512>}, {pipeline_mode = #tpu.pipeline_mode<synchronous>, transform_indices = @transform_3, window_bounds = array<i64: 1, 512>}, {transform_indices = @transform_4, window_bounds = array<i64: 8, 8, 128>}]} {
    %c0_i32 = arith.constant 0 : i32
    %0 = arith.cmpi eq, %arg1, %c0_i32 : i32
    %1 = arith.extui %0 : i1 to i32
    %c0_i32_0 = arith.constant 0 : i32
    %2 = arith.cmpi ne, %1, %c0_i32_0 : i32
    scf.if %2 {
      %cst_84 = arith.constant 0.000000e+00 : f32
      %296 = vector.broadcast %cst_84 : f32 to vector<8x128xf32>
      %c0_85 = arith.constant 0 : index
      %c0_86 = arith.constant 0 : index
      %297 = vector.load %arg8[%c0_85, %c0_86] : memref<8x128xf32, #tpu.memory_space<vmem>>, vector<8x128xf32>
      tpu.vector_store %arg8[%c0_85, %c0_86], %296 {strides = array<i32>} : memref<8x128xf32, #tpu.memory_space<vmem>>, vector<8x128xf32>,
      %cst_87 = arith.constant 0.000000e+00 : f32
      %298 = vector.broadcast %cst_87 : f32 to vector<8x128xf32>
      %c0_88 = arith.constant 0 : index
      %c0_89 = arith.constant 0 : index
      %299 = vector.load %arg9[%c0_88, %c0_89] : memref<8x128xf32, #tpu.memory_space<vmem>>, vector<8x128xf32>
      tpu.vector_store %arg9[%c0_88, %c0_89], %298 {strides = array<i32>} : memref<8x128xf32, #tpu.memory_space<vmem>>, vector<8x128xf32>,
    } else {
    }
    %c0 = arith.constant 0 : index
    %c0_1 = arith.constant 0 : index
    %c0_2 = arith.constant 0 : index
    %3 = vector.load %arg2[%c0, %c0_1, %c0_2] : memref<8x8x128xf32, #tpu.memory_space<vmem>>, vector<8x8x128xf32>
    %4 = vector.shape_cast %3 : vector<8x8x128xf32> to vector<64x128xf32>
    %c0_3 = arith.constant 0 : index
    %c0_4 = arith.constant 0 : index
    %5 = vector.load %arg3[%c0_3, %c0_4] : memref<128x512xf32, #tpu.memory_space<vmem>>, vector<128x512xf32>
    %cst = arith.constant dense<0.000000e+00> : vector<64x512xf32>
    %6 = tpu.matmul %4, %5, %cst {dimension_numbers = #tpu.dot_dimension_numbers<[1], [0], [0], [1], [0, 0, 1, 1], [], []>} : vector<64x128xf32>, vector<128x512xf32>, vector<64x512xf32> -> vector<64x512xf32>
    %c0_5 = arith.constant 0 : index
    %c0_6 = arith.constant 0 : index
    %7 = vector.load %arg5[%c0_5, %c0_6] : memref<1x512xf32, #tpu.memory_space<vmem>>, vector<1x512xf32>
    %8 = vector.broadcast %7 : vector<1x512xf32> to vector<64x512xf32>
    %9 = arith.addf %6, %8 : vector<64x512xf32>
    %c0_7 = arith.constant 0 : index
    %c0_8 = arith.constant 0 : index
    %10 = vector.load %arg7[%c0_7, %c0_8] : memref<64x512xf32, #tpu.memory_space<vmem>>, vector<64x512xf32>
    tpu.vector_store %arg7[%c0_7, %c0_8], %9 {strides = array<i32>} : memref<64x512xf32, #tpu.memory_space<vmem>>, vector<64x512xf32>,
    %c0_9 = arith.constant 0 : index
    %c0_10 = arith.constant 0 : index
    %11 = vector.load %arg4[%c0_9, %c0_10] : memref<128x512xf32, #tpu.memory_space<vmem>>, vector<128x512xf32>
    %c0_11 = arith.constant 0 : index
    %c0_12 = arith.constant 0 : index
    %12 = vector.load %arg8[%c0_11, %c0_12] : memref<8x128xf32, #tpu.memory_space<vmem>>, vector<8x128xf32>
    %c0_13 = arith.constant 0 : index
    %c0_14 = arith.constant 0 : index
    %13 = vector.load %arg9[%c0_13, %c0_14] : memref<8x128xf32, #tpu.memory_space<vmem>>, vector<8x128xf32>
    %c0_i32_15 = arith.constant 0 : i32
    %c8_i32 = arith.constant 8 : i32
    %14 = arith.muli %c0_i32_15, %c8_i32 : i32
    %15 = tpu.assume_multiple %14, 8 : i32
    %16 = arith.index_cast %15 : i32 to index
    %c0_16 = arith.constant 0 : index
    %17 = vector.load %arg7[%16, %c0_16] : memref<64x512xf32, #tpu.memory_space<vmem>>, vector<8x512xf32>
    %cst_17 = arith.constant dense<0.000000e+00> : vector<8x512xf32>
    %18 = tpu.matmul %12, %11, %cst_17 {dimension_numbers = #tpu.dot_dimension_numbers<[1], [0], [0], [1], [0, 0, 1, 1], [], []>} : vector<8x128xf32>, vector<128x512xf32>, vector<8x512xf32> -> vector<8x512xf32>
    %19 = arith.addf %17, %18 : vector<8x512xf32>
    %20 = vector.extract_strided_slice %19 {offsets = [0, 0], sizes = [8, 128], strides = [1, 1]} : vector<8x512xf32> to vector<8x128xf32>
    %21 = arith.negf %20 : vector<8x128xf32>
    %22 = math.exp %21 : vector<8x128xf32>
    %cst_18 = arith.constant 1.000000e+00 : f32
    %23 = vector.broadcast %cst_18 : f32 to vector<8x128xf32>
    %24 = arith.addf %23, %22 : vector<8x128xf32>
    %25 = arith.divf %23, %24 : vector<8x128xf32>
    %26 = vector.extract_strided_slice %19 {offsets = [0, 128], sizes = [8, 128], strides = [1, 1]} : vector<8x512xf32> to vector<8x128xf32>
    %27 = arith.negf %26 : vector<8x128xf32>
    %28 = math.exp %27 : vector<8x128xf32>
    %cst_19 = arith.constant 1.000000e+00 : f32
    %29 = vector.broadcast %cst_19 : f32 to vector<8x128xf32>
    %30 = arith.addf %29, %28 : vector<8x128xf32>
    %31 = arith.divf %29, %30 : vector<8x128xf32>
    %32 = vector.extract_strided_slice %19 {offsets = [0, 256], sizes = [8, 128], strides = [1, 1]} : vector<8x512xf32> to vector<8x128xf32>
    %33 = math.tanh %32 : vector<8x128xf32>
    %34 = vector.extract_strided_slice %19 {offsets = [0, 384], sizes = [8, 128], strides = [1, 1]} : vector<8x512xf32> to vector<8x128xf32>
    %35 = arith.negf %34 : vector<8x128xf32>
    %36 = math.exp %35 : vector<8x128xf32>
    %cst_20 = arith.constant 1.000000e+00 : f32
    %37 = vector.broadcast %cst_20 : f32 to vector<8x128xf32>
    %38 = arith.addf %37, %36 : vector<8x128xf32>
    %39 = arith.divf %37, %38 : vector<8x128xf32>
    %40 = arith.mulf %31, %13 : vector<8x128xf32>
    %41 = arith.mulf %25, %33 : vector<8x128xf32>
    %42 = arith.addf %40, %41 : vector<8x128xf32>
    %43 = math.tanh %42 : vector<8x128xf32>
    %44 = arith.mulf %39, %43 : vector<8x128xf32>
    %45 = arith.index_cast %c0_i32_15 : i32 to index
    %c0_21 = arith.constant 0 : index
    %c0_22 = arith.constant 0 : index
    %46 = vector.load %arg6[%45, %c0_21, %c0_22] : memref<8x8x128xf32, #tpu.memory_space<vmem>>, vector<1x8x128xf32>
    %47 = vector.shape_cast %46 : vector<1x8x128xf32> to vector<8x128xf32>
    %48 = vector.shape_cast %44 : vector<8x128xf32> to vector<1x8x128xf32>
    tpu.vector_store %arg6[%45, %c0_21, %c0_22], %48 {strides = array<i32>} : memref<8x8x128xf32, #tpu.memory_space<vmem>>, vector<1x8x128xf32>,
    %c1_i32 = arith.constant 1 : i32
    %c8_i32_23 = arith.constant 8 : i32
    %49 = arith.muli %c1_i32, %c8_i32_23 : i32
    %50 = tpu.assume_multiple %49, 8 : i32
    %51 = arith.index_cast %50 : i32 to index
    %c0_24 = arith.constant 0 : index
    %52 = vector.load %arg7[%51, %c0_24] : memref<64x512xf32, #tpu.memory_space<vmem>>, vector<8x512xf32>
    %cst_25 = arith.constant dense<0.000000e+00> : vector<8x512xf32>
    %53 = tpu.matmul %44, %11, %cst_25 {dimension_numbers = #tpu.dot_dimension_numbers<[1], [0], [0], [1], [0, 0, 1, 1], [], []>} : vector<8x128xf32>, vector<128x512xf32>, vector<8x512xf32> -> vector<8x512xf32>
    %54 = arith.addf %52, %53 : vector<8x512xf32>
    %55 = vector.extract_strided_slice %54 {offsets = [0, 0], sizes = [8, 128], strides = [1, 1]} : vector<8x512xf32> to vector<8x128xf32>
    %56 = arith.negf %55 : vector<8x128xf32>
    %57 = math.exp %56 : vector<8x128xf32>
    %cst_26 = arith.constant 1.000000e+00 : f32
    %58 = vector.broadcast %cst_26 : f32 to vector<8x128xf32>
    %59 = arith.addf %58, %57 : vector<8x128xf32>
    %60 = arith.divf %58, %59 : vector<8x128xf32>
    %61 = vector.extract_strided_slice %54 {offsets = [0, 128], sizes = [8, 128], strides = [1, 1]} : vector<8x512xf32> to vector<8x128xf32>
    %62 = arith.negf %61 : vector<8x128xf32>
    %63 = math.exp %62 : vector<8x128xf32>
    %cst_27 = arith.constant 1.000000e+00 : f32
    %64 = vector.broadcast %cst_27 : f32 to vector<8x128xf32>
    %65 = arith.addf %64, %63 : vector<8x128xf32>
    %66 = arith.divf %64, %65 : vector<8x128xf32>
    %67 = vector.extract_strided_slice %54 {offsets = [0, 256], sizes = [8, 128], strides = [1, 1]} : vector<8x512xf32> to vector<8x128xf32>
    %68 = math.tanh %67 : vector<8x128xf32>
    %69 = vector.extract_strided_slice %54 {offsets = [0, 384], sizes = [8, 128], strides = [1, 1]} : vector<8x512xf32> to vector<8x128xf32>
    %70 = arith.negf %69 : vector<8x128xf32>
    %71 = math.exp %70 : vector<8x128xf32>
    %cst_28 = arith.constant 1.000000e+00 : f32
    %72 = vector.broadcast %cst_28 : f32 to vector<8x128xf32>
    %73 = arith.addf %72, %71 : vector<8x128xf32>
    %74 = arith.divf %72, %73 : vector<8x128xf32>
    %75 = arith.mulf %66, %42 : vector<8x128xf32>
    %76 = arith.mulf %60, %68 : vector<8x128xf32>
    %77 = arith.addf %75, %76 : vector<8x128xf32>
    %78 = math.tanh %77 : vector<8x128xf32>
    %79 = arith.mulf %74, %78 : vector<8x128xf32>
    %80 = arith.index_cast %c1_i32 : i32 to index
    %c0_29 = arith.constant 0 : index
    %c0_30 = arith.constant 0 : index
    %81 = vector.load %arg6[%80, %c0_29, %c0_30] : memref<8x8x128xf32, #tpu.memory_space<vmem>>, vector<1x8x128xf32>
    %82 = vector.shape_cast %81 : vector<1x8x128xf32> to vector<8x128xf32>
    %83 = vector.shape_cast %79 : vector<8x128xf32> to vector<1x8x128xf32>
    tpu.vector_store %arg6[%80, %c0_29, %c0_30], %83 {strides = array<i32>} : memref<8x8x128xf32, #tpu.memory_space<vmem>>, vector<1x8x128xf32>,
    %c2_i32 = arith.constant 2 : i32
    %c8_i32_31 = arith.constant 8 : i32
    %84 = arith.muli %c2_i32, %c8_i32_31 : i32
    %85 = tpu.assume_multiple %84, 8 : i32
    %86 = arith.index_cast %85 : i32 to index
    %c0_32 = arith.constant 0 : index
    %87 = vector.load %arg7[%86, %c0_32] : memref<64x512xf32, #tpu.memory_space<vmem>>, vector<8x512xf32>
    %cst_33 = arith.constant dense<0.000000e+00> : vector<8x512xf32>
    %88 = tpu.matmul %79, %11, %cst_33 {dimension_numbers = #tpu.dot_dimension_numbers<[1], [0], [0], [1], [0, 0, 1, 1], [], []>} : vector<8x128xf32>, vector<128x512xf32>, vector<8x512xf32> -> vector<8x512xf32>
    %89 = arith.addf %87, %88 : vector<8x512xf32>
    %90 = vector.extract_strided_slice %89 {offsets = [0, 0], sizes = [8, 128], strides = [1, 1]} : vector<8x512xf32> to vector<8x128xf32>
    %91 = arith.negf %90 : vector<8x128xf32>
    %92 = math.exp %91 : vector<8x128xf32>
    %cst_34 = arith.constant 1.000000e+00 : f32
    %93 = vector.broadcast %cst_34 : f32 to vector<8x128xf32>
    %94 = arith.addf %93, %92 : vector<8x128xf32>
    %95 = arith.divf %93, %94 : vector<8x128xf32>
    %96 = vector.extract_strided_slice %89 {offsets = [0, 128], sizes = [8, 128], strides = [1, 1]} : vector<8x512xf32> to vector<8x128xf32>
    %97 = arith.negf %96 : vector<8x128xf32>
    %98 = math.exp %97 : vector<8x128xf32>
    %cst_35 = arith.constant 1.000000e+00 : f32
    %99 = vector.broadcast %cst_35 : f32 to vector<8x128xf32>
    %100 = arith.addf %99, %98 : vector<8x128xf32>
    %101 = arith.divf %99, %100 : vector<8x128xf32>
    %102 = vector.extract_strided_slice %89 {offsets = [0, 256], sizes = [8, 128], strides = [1, 1]} : vector<8x512xf32> to vector<8x128xf32>
    %103 = math.tanh %102 : vector<8x128xf32>
    %104 = vector.extract_strided_slice %89 {offsets = [0, 384], sizes = [8, 128], strides = [1, 1]} : vector<8x512xf32> to vector<8x128xf32>
    %105 = arith.negf %104 : vector<8x128xf32>
    %106 = math.exp %105 : vector<8x128xf32>
    %cst_36 = arith.constant 1.000000e+00 : f32
    %107 = vector.broadcast %cst_36 : f32 to vector<8x128xf32>
    %108 = arith.addf %107, %106 : vector<8x128xf32>
    %109 = arith.divf %107, %108 : vector<8x128xf32>
    %110 = arith.mulf %101, %77 : vector<8x128xf32>
    %111 = arith.mulf %95, %103 : vector<8x128xf32>
    %112 = arith.addf %110, %111 : vector<8x128xf32>
    %113 = math.tanh %112 : vector<8x128xf32>
    %114 = arith.mulf %109, %113 : vector<8x128xf32>
    %115 = arith.index_cast %c2_i32 : i32 to index
    %c0_37 = arith.constant 0 : index
    %c0_38 = arith.constant 0 : index
    %116 = vector.load %arg6[%115, %c0_37, %c0_38] : memref<8x8x128xf32, #tpu.memory_space<vmem>>, vector<1x8x128xf32>
    %117 = vector.shape_cast %116 : vector<1x8x128xf32> to vector<8x128xf32>
    %118 = vector.shape_cast %114 : vector<8x128xf32> to vector<1x8x128xf32>
    tpu.vector_store %arg6[%115, %c0_37, %c0_38], %118 {strides = array<i32>} : memref<8x8x128xf32, #tpu.memory_space<vmem>>, vector<1x8x128xf32>,
    %c3_i32 = arith.constant 3 : i32
    %c8_i32_39 = arith.constant 8 : i32
    %119 = arith.muli %c3_i32, %c8_i32_39 : i32
    %120 = tpu.assume_multiple %119, 8 : i32
    %121 = arith.index_cast %120 : i32 to index
    %c0_40 = arith.constant 0 : index
    %122 = vector.load %arg7[%121, %c0_40] : memref<64x512xf32, #tpu.memory_space<vmem>>, vector<8x512xf32>
    %cst_41 = arith.constant dense<0.000000e+00> : vector<8x512xf32>
    %123 = tpu.matmul %114, %11, %cst_41 {dimension_numbers = #tpu.dot_dimension_numbers<[1], [0], [0], [1], [0, 0, 1, 1], [], []>} : vector<8x128xf32>, vector<128x512xf32>, vector<8x512xf32> -> vector<8x512xf32>
    %124 = arith.addf %122, %123 : vector<8x512xf32>
    %125 = vector.extract_strided_slice %124 {offsets = [0, 0], sizes = [8, 128], strides = [1, 1]} : vector<8x512xf32> to vector<8x128xf32>
    %126 = arith.negf %125 : vector<8x128xf32>
    %127 = math.exp %126 : vector<8x128xf32>
    %cst_42 = arith.constant 1.000000e+00 : f32
    %128 = vector.broadcast %cst_42 : f32 to vector<8x128xf32>
    %129 = arith.addf %128, %127 : vector<8x128xf32>
    %130 = arith.divf %128, %129 : vector<8x128xf32>
    %131 = vector.extract_strided_slice %124 {offsets = [0, 128], sizes = [8, 128], strides = [1, 1]} : vector<8x512xf32> to vector<8x128xf32>
    %132 = arith.negf %131 : vector<8x128xf32>
    %133 = math.exp %132 : vector<8x128xf32>
    %cst_43 = arith.constant 1.000000e+00 : f32
    %134 = vector.broadcast %cst_43 : f32 to vector<8x128xf32>
    %135 = arith.addf %134, %133 : vector<8x128xf32>
    %136 = arith.divf %134, %135 : vector<8x128xf32>
    %137 = vector.extract_strided_slice %124 {offsets = [0, 256], sizes = [8, 128], strides = [1, 1]} : vector<8x512xf32> to vector<8x128xf32>
    %138 = math.tanh %137 : vector<8x128xf32>
    %139 = vector.extract_strided_slice %124 {offsets = [0, 384], sizes = [8, 128], strides = [1, 1]} : vector<8x512xf32> to vector<8x128xf32>
    %140 = arith.negf %139 : vector<8x128xf32>
    %141 = math.exp %140 : vector<8x128xf32>
    %cst_44 = arith.constant 1.000000e+00 : f32
    %142 = vector.broadcast %cst_44 : f32 to vector<8x128xf32>
    %143 = arith.addf %142, %141 : vector<8x128xf32>
    %144 = arith.divf %142, %143 : vector<8x128xf32>
    %145 = arith.mulf %136, %112 : vector<8x128xf32>
    %146 = arith.mulf %130, %138 : vector<8x128xf32>
    %147 = arith.addf %145, %146 : vector<8x128xf32>
    %148 = math.tanh %147 : vector<8x128xf32>
    %149 = arith.mulf %144, %148 : vector<8x128xf32>
    %150 = arith.index_cast %c3_i32 : i32 to index
    %c0_45 = arith.constant 0 : index
    %c0_46 = arith.constant 0 : index
    %151 = vector.load %arg6[%150, %c0_45, %c0_46] : memref<8x8x128xf32, #tpu.memory_space<vmem>>, vector<1x8x128xf32>
    %152 = vector.shape_cast %151 : vector<1x8x128xf32> to vector<8x128xf32>
    %153 = vector.shape_cast %149 : vector<8x128xf32> to vector<1x8x128xf32>
    tpu.vector_store %arg6[%150, %c0_45, %c0_46], %153 {strides = array<i32>} : memref<8x8x128xf32, #tpu.memory_space<vmem>>, vector<1x8x128xf32>,
    %c4_i32 = arith.constant 4 : i32
    %c8_i32_47 = arith.constant 8 : i32
    %154 = arith.muli %c4_i32, %c8_i32_47 : i32
    %155 = tpu.assume_multiple %154, 8 : i32
    %156 = arith.index_cast %155 : i32 to index
    %c0_48 = arith.constant 0 : index
    %157 = vector.load %arg7[%156, %c0_48] : memref<64x512xf32, #tpu.memory_space<vmem>>, vector<8x512xf32>
    %cst_49 = arith.constant dense<0.000000e+00> : vector<8x512xf32>
    %158 = tpu.matmul %149, %11, %cst_49 {dimension_numbers = #tpu.dot_dimension_numbers<[1], [0], [0], [1], [0, 0, 1, 1], [], []>} : vector<8x128xf32>, vector<128x512xf32>, vector<8x512xf32> -> vector<8x512xf32>
    %159 = arith.addf %157, %158 : vector<8x512xf32>
    %160 = vector.extract_strided_slice %159 {offsets = [0, 0], sizes = [8, 128], strides = [1, 1]} : vector<8x512xf32> to vector<8x128xf32>
    %161 = arith.negf %160 : vector<8x128xf32>
    %162 = math.exp %161 : vector<8x128xf32>
    %cst_50 = arith.constant 1.000000e+00 : f32
    %163 = vector.broadcast %cst_50 : f32 to vector<8x128xf32>
    %164 = arith.addf %163, %162 : vector<8x128xf32>
    %165 = arith.divf %163, %164 : vector<8x128xf32>
    %166 = vector.extract_strided_slice %159 {offsets = [0, 128], sizes = [8, 128], strides = [1, 1]} : vector<8x512xf32> to vector<8x128xf32>
    %167 = arith.negf %166 : vector<8x128xf32>
    %168 = math.exp %167 : vector<8x128xf32>
    %cst_51 = arith.constant 1.000000e+00 : f32
    %169 = vector.broadcast %cst_51 : f32 to vector<8x128xf32>
    %170 = arith.addf %169, %168 : vector<8x128xf32>
    %171 = arith.divf %169, %170 : vector<8x128xf32>
    %172 = vector.extract_strided_slice %159 {offsets = [0, 256], sizes = [8, 128], strides = [1, 1]} : vector<8x512xf32> to vector<8x128xf32>
    %173 = math.tanh %172 : vector<8x128xf32>
    %174 = vector.extract_strided_slice %159 {offsets = [0, 384], sizes = [8, 128], strides = [1, 1]} : vector<8x512xf32> to vector<8x128xf32>
    %175 = arith.negf %174 : vector<8x128xf32>
    %176 = math.exp %175 : vector<8x128xf32>
    %cst_52 = arith.constant 1.000000e+00 : f32
    %177 = vector.broadcast %cst_52 : f32 to vector<8x128xf32>
    %178 = arith.addf %177, %176 : vector<8x128xf32>
    %179 = arith.divf %177, %178 : vector<8x128xf32>
    %180 = arith.mulf %171, %147 : vector<8x128xf32>
    %181 = arith.mulf %165, %173 : vector<8x128xf32>
    %182 = arith.addf %180, %181 : vector<8x128xf32>
    %183 = math.tanh %182 : vector<8x128xf32>
    %184 = arith.mulf %179, %183 : vector<8x128xf32>
    %185 = arith.index_cast %c4_i32 : i32 to index
    %c0_53 = arith.constant 0 : index
    %c0_54 = arith.constant 0 : index
    %186 = vector.load %arg6[%185, %c0_53, %c0_54] : memref<8x8x128xf32, #tpu.memory_space<vmem>>, vector<1x8x128xf32>
    %187 = vector.shape_cast %186 : vector<1x8x128xf32> to vector<8x128xf32>
    %188 = vector.shape_cast %184 : vector<8x128xf32> to vector<1x8x128xf32>
    tpu.vector_store %arg6[%185, %c0_53, %c0_54], %188 {strides = array<i32>} : memref<8x8x128xf32, #tpu.memory_space<vmem>>, vector<1x8x128xf32>,
    %c5_i32 = arith.constant 5 : i32
    %c8_i32_55 = arith.constant 8 : i32
    %189 = arith.muli %c5_i32, %c8_i32_55 : i32
    %190 = tpu.assume_multiple %189, 8 : i32
    %191 = arith.index_cast %190 : i32 to index
    %c0_56 = arith.constant 0 : index
    %192 = vector.load %arg7[%191, %c0_56] : memref<64x512xf32, #tpu.memory_space<vmem>>, vector<8x512xf32>
    %cst_57 = arith.constant dense<0.000000e+00> : vector<8x512xf32>
    %193 = tpu.matmul %184, %11, %cst_57 {dimension_numbers = #tpu.dot_dimension_numbers<[1], [0], [0], [1], [0, 0, 1, 1], [], []>} : vector<8x128xf32>, vector<128x512xf32>, vector<8x512xf32> -> vector<8x512xf32>
    %194 = arith.addf %192, %193 : vector<8x512xf32>
    %195 = vector.extract_strided_slice %194 {offsets = [0, 0], sizes = [8, 128], strides = [1, 1]} : vector<8x512xf32> to vector<8x128xf32>
    %196 = arith.negf %195 : vector<8x128xf32>
    %197 = math.exp %196 : vector<8x128xf32>
    %cst_58 = arith.constant 1.000000e+00 : f32
    %198 = vector.broadcast %cst_58 : f32 to vector<8x128xf32>
    %199 = arith.addf %198, %197 : vector<8x128xf32>
    %200 = arith.divf %198, %199 : vector<8x128xf32>
    %201 = vector.extract_strided_slice %194 {offsets = [0, 128], sizes = [8, 128], strides = [1, 1]} : vector<8x512xf32> to vector<8x128xf32>
    %202 = arith.negf %201 : vector<8x128xf32>
    %203 = math.exp %202 : vector<8x128xf32>
    %cst_59 = arith.constant 1.000000e+00 : f32
    %204 = vector.broadcast %cst_59 : f32 to vector<8x128xf32>
    %205 = arith.addf %204, %203 : vector<8x128xf32>
    %206 = arith.divf %204, %205 : vector<8x128xf32>
    %207 = vector.extract_strided_slice %194 {offsets = [0, 256], sizes = [8, 128], strides = [1, 1]} : vector<8x512xf32> to vector<8x128xf32>
    %208 = math.tanh %207 : vector<8x128xf32>
    %209 = vector.extract_strided_slice %194 {offsets = [0, 384], sizes = [8, 128], strides = [1, 1]} : vector<8x512xf32> to vector<8x128xf32>
    %210 = arith.negf %209 : vector<8x128xf32>
    %211 = math.exp %210 : vector<8x128xf32>
    %cst_60 = arith.constant 1.000000e+00 : f32
    %212 = vector.broadcast %cst_60 : f32 to vector<8x128xf32>
    %213 = arith.addf %212, %211 : vector<8x128xf32>
    %214 = arith.divf %212, %213 : vector<8x128xf32>
    %215 = arith.mulf %206, %182 : vector<8x128xf32>
    %216 = arith.mulf %200, %208 : vector<8x128xf32>
    %217 = arith.addf %215, %216 : vector<8x128xf32>
    %218 = math.tanh %217 : vector<8x128xf32>
    %219 = arith.mulf %214, %218 : vector<8x128xf32>
    %220 = arith.index_cast %c5_i32 : i32 to index
    %c0_61 = arith.constant 0 : index
    %c0_62 = arith.constant 0 : index
    %221 = vector.load %arg6[%220, %c0_61, %c0_62] : memref<8x8x128xf32, #tpu.memory_space<vmem>>, vector<1x8x128xf32>
    %222 = vector.shape_cast %221 : vector<1x8x128xf32> to vector<8x128xf32>
    %223 = vector.shape_cast %219 : vector<8x128xf32> to vector<1x8x128xf32>
    tpu.vector_store %arg6[%220, %c0_61, %c0_62], %223 {strides = array<i32>} : memref<8x8x128xf32, #tpu.memory_space<vmem>>, vector<1x8x128xf32>,
    %c6_i32 = arith.constant 6 : i32
    %c8_i32_63 = arith.constant 8 : i32
    %224 = arith.muli %c6_i32, %c8_i32_63 : i32
    %225 = tpu.assume_multiple %224, 8 : i32
    %226 = arith.index_cast %225 : i32 to index
    %c0_64 = arith.constant 0 : index
    %227 = vector.load %arg7[%226, %c0_64] : memref<64x512xf32, #tpu.memory_space<vmem>>, vector<8x512xf32>
    %cst_65 = arith.constant dense<0.000000e+00> : vector<8x512xf32>
    %228 = tpu.matmul %219, %11, %cst_65 {dimension_numbers = #tpu.dot_dimension_numbers<[1], [0], [0], [1], [0, 0, 1, 1], [], []>} : vector<8x128xf32>, vector<128x512xf32>, vector<8x512xf32> -> vector<8x512xf32>
    %229 = arith.addf %227, %228 : vector<8x512xf32>
    %230 = vector.extract_strided_slice %229 {offsets = [0, 0], sizes = [8, 128], strides = [1, 1]} : vector<8x512xf32> to vector<8x128xf32>
    %231 = arith.negf %230 : vector<8x128xf32>
    %232 = math.exp %231 : vector<8x128xf32>
    %cst_66 = arith.constant 1.000000e+00 : f32
    %233 = vector.broadcast %cst_66 : f32 to vector<8x128xf32>
    %234 = arith.addf %233, %232 : vector<8x128xf32>
    %235 = arith.divf %233, %234 : vector<8x128xf32>
    %236 = vector.extract_strided_slice %229 {offsets = [0, 128], sizes = [8, 128], strides = [1, 1]} : vector<8x512xf32> to vector<8x128xf32>
    %237 = arith.negf %236 : vector<8x128xf32>
    %238 = math.exp %237 : vector<8x128xf32>
    %cst_67 = arith.constant 1.000000e+00 : f32
    %239 = vector.broadcast %cst_67 : f32 to vector<8x128xf32>
    %240 = arith.addf %239, %238 : vector<8x128xf32>
    %241 = arith.divf %239, %240 : vector<8x128xf32>
    %242 = vector.extract_strided_slice %229 {offsets = [0, 256], sizes = [8, 128], strides = [1, 1]} : vector<8x512xf32> to vector<8x128xf32>
    %243 = math.tanh %242 : vector<8x128xf32>
    %244 = vector.extract_strided_slice %229 {offsets = [0, 384], sizes = [8, 128], strides = [1, 1]} : vector<8x512xf32> to vector<8x128xf32>
    %245 = arith.negf %244 : vector<8x128xf32>
    %246 = math.exp %245 : vector<8x128xf32>
    %cst_68 = arith.constant 1.000000e+00 : f32
    %247 = vector.broadcast %cst_68 : f32 to vector<8x128xf32>
    %248 = arith.addf %247, %246 : vector<8x128xf32>
    %249 = arith.divf %247, %248 : vector<8x128xf32>
    %250 = arith.mulf %241, %217 : vector<8x128xf32>
    %251 = arith.mulf %235, %243 : vector<8x128xf32>
    %252 = arith.addf %250, %251 : vector<8x128xf32>
    %253 = math.tanh %252 : vector<8x128xf32>
    %254 = arith.mulf %249, %253 : vector<8x128xf32>
    %255 = arith.index_cast %c6_i32 : i32 to index
    %c0_69 = arith.constant 0 : index
    %c0_70 = arith.constant 0 : index
    %256 = vector.load %arg6[%255, %c0_69, %c0_70] : memref<8x8x128xf32, #tpu.memory_space<vmem>>, vector<1x8x128xf32>
    %257 = vector.shape_cast %256 : vector<1x8x128xf32> to vector<8x128xf32>
    %258 = vector.shape_cast %254 : vector<8x128xf32> to vector<1x8x128xf32>
    tpu.vector_store %arg6[%255, %c0_69, %c0_70], %258 {strides = array<i32>} : memref<8x8x128xf32, #tpu.memory_space<vmem>>, vector<1x8x128xf32>,
    %c7_i32 = arith.constant 7 : i32
    %c8_i32_71 = arith.constant 8 : i32
    %259 = arith.muli %c7_i32, %c8_i32_71 : i32
    %260 = tpu.assume_multiple %259, 8 : i32
    %261 = arith.index_cast %260 : i32 to index
    %c0_72 = arith.constant 0 : index
    %262 = vector.load %arg7[%261, %c0_72] : memref<64x512xf32, #tpu.memory_space<vmem>>, vector<8x512xf32>
    %cst_73 = arith.constant dense<0.000000e+00> : vector<8x512xf32>
    %263 = tpu.matmul %254, %11, %cst_73 {dimension_numbers = #tpu.dot_dimension_numbers<[1], [0], [0], [1], [0, 0, 1, 1], [], []>} : vector<8x128xf32>, vector<128x512xf32>, vector<8x512xf32> -> vector<8x512xf32>
    %264 = arith.addf %262, %263 : vector<8x512xf32>
    %265 = vector.extract_strided_slice %264 {offsets = [0, 0], sizes = [8, 128], strides = [1, 1]} : vector<8x512xf32> to vector<8x128xf32>
    %266 = arith.negf %265 : vector<8x128xf32>
    %267 = math.exp %266 : vector<8x128xf32>
    %cst_74 = arith.constant 1.000000e+00 : f32
    %268 = vector.broadcast %cst_74 : f32 to vector<8x128xf32>
    %269 = arith.addf %268, %267 : vector<8x128xf32>
    %270 = arith.divf %268, %269 : vector<8x128xf32>
    %271 = vector.extract_strided_slice %264 {offsets = [0, 128], sizes = [8, 128], strides = [1, 1]} : vector<8x512xf32> to vector<8x128xf32>
    %272 = arith.negf %271 : vector<8x128xf32>
    %273 = math.exp %272 : vector<8x128xf32>
    %cst_75 = arith.constant 1.000000e+00 : f32
    %274 = vector.broadcast %cst_75 : f32 to vector<8x128xf32>
    %275 = arith.addf %274, %273 : vector<8x128xf32>
    %276 = arith.divf %274, %275 : vector<8x128xf32>
    %277 = vector.extract_strided_slice %264 {offsets = [0, 256], sizes = [8, 128], strides = [1, 1]} : vector<8x512xf32> to vector<8x128xf32>
    %278 = math.tanh %277 : vector<8x128xf32>
    %279 = vector.extract_strided_slice %264 {offsets = [0, 384], sizes = [8, 128], strides = [1, 1]} : vector<8x512xf32> to vector<8x128xf32>
    %280 = arith.negf %279 : vector<8x128xf32>
    %281 = math.exp %280 : vector<8x128xf32>
    %cst_76 = arith.constant 1.000000e+00 : f32
    %282 = vector.broadcast %cst_76 : f32 to vector<8x128xf32>
    %283 = arith.addf %282, %281 : vector<8x128xf32>
    %284 = arith.divf %282, %283 : vector<8x128xf32>
    %285 = arith.mulf %276, %252 : vector<8x128xf32>
    %286 = arith.mulf %270, %278 : vector<8x128xf32>
    %287 = arith.addf %285, %286 : vector<8x128xf32>
    %288 = math.tanh %287 : vector<8x128xf32>
    %289 = arith.mulf %284, %288 : vector<8x128xf32>
    %290 = arith.index_cast %c7_i32 : i32 to index
    %c0_77 = arith.constant 0 : index
    %c0_78 = arith.constant 0 : index
    %291 = vector.load %arg6[%290, %c0_77, %c0_78] : memref<8x8x128xf32, #tpu.memory_space<vmem>>, vector<1x8x128xf32>
    %292 = vector.shape_cast %291 : vector<1x8x128xf32> to vector<8x128xf32>
    %293 = vector.shape_cast %289 : vector<8x128xf32> to vector<1x8x128xf32>
    tpu.vector_store %arg6[%290, %c0_77, %c0_78], %293 {strides = array<i32>} : memref<8x8x128xf32, #tpu.memory_space<vmem>>, vector<1x8x128xf32>,
    %c8_i32_79 = arith.constant 8 : i32
    %c0_80 = arith.constant 0 : index
    %c0_81 = arith.constant 0 : index
    %294 = vector.load %arg8[%c0_80, %c0_81] : memref<8x128xf32, #tpu.memory_space<vmem>>, vector<8x128xf32>
    tpu.vector_store %arg8[%c0_80, %c0_81], %289 {strides = array<i32>} : memref<8x128xf32, #tpu.memory_space<vmem>>, vector<8x128xf32>,
    %c0_82 = arith.constant 0 : index
    %c0_83 = arith.constant 0 : index
    %295 = vector.load %arg9[%c0_82, %c0_83] : memref<8x128xf32, #tpu.memory_space<vmem>>, vector<8x128xf32>
    tpu.vector_store %arg9[%c0_82, %c0_83], %287 {strides = array<i32>} : memref<8x128xf32, #tpu.memory_space<vmem>>, vector<8x128xf32>,
    return
  }
  func.func @transform_0(%arg0: i32, %arg1: i32) -> (i32, i32, i32) {
    %c0_i32 = arith.constant 0 : i32
    %c0_i32_0 = arith.constant 0 : i32
    return %arg1, %arg0, %c0_i32 : i32, i32, i32
  }
  func.func @transform_1(%arg0: i32, %arg1: i32) -> (i32, i32) {
    %c0_i32 = arith.constant 0 : i32
    %c0_i32_0 = arith.constant 0 : i32
    %c0_i32_1 = arith.constant 0 : i32
    return %c0_i32, %c0_i32_0 : i32, i32
  }
  func.func @transform_2(%arg0: i32, %arg1: i32) -> (i32, i32) {
    %c0_i32 = arith.constant 0 : i32
    %c0_i32_0 = arith.constant 0 : i32
    %c0_i32_1 = arith.constant 0 : i32
    return %c0_i32, %c0_i32_0 : i32, i32
  }
  func.func @transform_3(%arg0: i32, %arg1: i32) -> (i32, i32) {
    %c0_i32 = arith.constant 0 : i32
    %c0_i32_0 = arith.constant 0 : i32
    %c0_i32_1 = arith.constant 0 : i32
    return %c0_i32, %c0_i32_0 : i32, i32
  }
  func.func @transform_4(%arg0: i32, %arg1: i32) -> (i32, i32, i32) {
    %c0_i32 = arith.constant 0 : i32
    %c0_i32_0 = arith.constant 0 : i32
    return %arg1, %arg0, %c0_i32 : i32, i32, i32
  }
}

</mosaic_0001>

<llo_original>
// kernel: lstm_forward.1
$region0: #{lstm_forward.1}
  #allocation0 [shape = 'u32[]', space=smem, size = 0x4, offset = 0x4, fixed_abs, tag = 'smem constant byte address 0x4 - core index']
  #allocation1 [shape = 'u32[144,128]{1,0:T(1,128)}', space=vmem, size = 0x12000, scoped, tag = 'internal scratch']
  #allocation2 [shape = 'f32[64,512]{1,0:T(8,128)}', space=vmem, size = 0x20000, scoped, tag = 'scratch operand']
  #allocation3 [shape = 'f32[8,128]{1,0:T(8,128)}', space=vmem, size = 0x1000, scoped, tag = 'scratch operand']
  #allocation4 [shape = 'f32[8,128]{1,0:T(8,128)}', space=vmem, size = 0x1000, scoped, tag = 'scratch operand']
  %s0 = inlined_call_operand.vmem [shape: f32[8,8,128], index: 0, kind: input, shape index: {}]
  %s1 = inlined_call_operand.vmem [shape: f32[128,512], index: 1, kind: input, shape index: {}]
  %s2 = inlined_call_operand.vmem [shape: f32[128,512], index: 2, kind: input, shape index: {}]
  %s3 = inlined_call_operand.vmem [shape: f32[1,512], index: 3, kind: input, shape index: {}]
  %s4 = inlined_call_operand.vmem [shape: f32[8,8,128], index: 4, kind: output, shape index: {}]
  %s5 = sld [smem:[#allocation0]]
  $region30: #{lstm_forward.1} parent=0
    _
  %s7 = ssub.s32 1, %s5
  %s8 = scalar_select 0, %s7, %s5
  // Predicated region
  $region2: #{lstm_forward.1} parent=0 // pred_check
    _
  $region3: #{lstm_forward.1} parent=0 // pred_check_branch
    %10 = sbr.rel (0) target = $region5
  $region4: #{lstm_forward.1} parent=0 // pred_region
    _
  $region5: #{lstm_forward.1} parent=0 // pred_fallthru
    _
  // Predicated region
  $region6: #{lstm_forward.1} parent=0 // pred_check
    _
  $region7: #{lstm_forward.1} parent=0 // pred_check_branch
    %12 = sbr.rel (0) target = $region9
  $region8: #{lstm_forward.1} parent=0 // pred_region
    _
  $region9: #{lstm_forward.1} parent=0 // pred_fallthru
    _
  // Predicated region
  $region10: #{lstm_forward.1} parent=0 // pred_check
    _
  $region11: #{lstm_forward.1} parent=0 // pred_check_branch
    %14 = sbr.rel (0) target = $region13
  $region12: #{lstm_forward.1} parent=0 // pred_region
    _
  $region13: #{lstm_forward.1} parent=0 // pred_fallthru
    _
  // Predicated region
  $region14: #{lstm_forward.1} parent=0 // pred_check
    _
  $region15: #{lstm_forward.1} parent=0 // pred_check_branch
    %16 = sbr.rel (0) target = $region17
  $region16: #{lstm_forward.1} parent=0 // pred_region
    _
  $region17: #{lstm_forward.1} parent=0 // pred_fallthru
    _
  %p17 = scmp.eq.s32.totalorder 0, 0
  // Predicated region
  $region18: #{lstm_forward.1} parent=0 // pred_check
    %p18 = pneg %p17
  $region19: #{lstm_forward.1} parent=0 // pred_check_branch
    %20 = sbr.rel (%p18) target = $region21
  $region20: #{lstm_forward.1} parent=0 // pred_region
    %21 = vst [vmem:[#allocation3] sm:$0xff] 0.0
    %22 = vst [vmem:[#allocation4] sm:$0xff] 0.0
  $region21: #{lstm_forward.1} parent=0 // pred_fallthru
    _
  %v23 = vld [vmem:[%s0] sm:$0xff]
  %v24 = vld [vmem:[%s0 + $0x8] sm:$0xff]
  %v25 = vld [vmem:[%s0 + $0x10] sm:$0xff]
  %v26 = vld [vmem:[%s0 + $0x18] sm:$0xff]
  %v27 = vld [vmem:[%s0 + $0x20] sm:$0xff]
  %v28 = vld [vmem:[%s0 + $0x28] sm:$0xff]
  %v29 = vld [vmem:[%s0 + $0x30] sm:$0xff]
  %v30 = vld [vmem:[%s0 + $0x38] sm:$0xff]
  %v31 = vld [vmem:[%s1] sm:$0xff]
  %v32 = vld [vmem:[%s1 + $0x8] sm:$0xff]
  %v33 = vld [vmem:[%s1 + $0x10] sm:$0xff]
  %v34 = vld [vmem:[%s1 + $0x18] sm:$0xff]
  %v35 = vld [vmem:[%s1 + $0x20] sm:$0xff]
  %v36 = vld [vmem:[%s1 + $0x28] sm:$0xff]
  %v37 = vld [vmem:[%s1 + $0x30] sm:$0xff]
  %v38 = vld [vmem:[%s1 + $0x38] sm:$0xff]
  %v39 = vld [vmem:[%s1 + $0x40] sm:$0xff]
  %v40 = vld [vmem:[%s1 + $0x48] sm:$0xff]
  %v41 = vld [vmem:[%s1 + $0x50] sm:$0xff]
  %v42 = vld [vmem:[%s1 + $0x58] sm:$0xff]
  %v43 = vld [vmem:[%s1 + $0x60] sm:$0xff]
  %v44 = vld [vmem:[%s1 + $0x68] sm:$0xff]
  %v45 = vld [vmem:[%s1 + $0x70] sm:$0xff]
  %v46 = vld [vmem:[%s1 + $0x78] sm:$0xff]
  %v47 = vld [vmem:[%s1 + $0x80] sm:$0xff]
  %v48 = vld [vmem:[%s1 + $0x88] sm:$0xff]
  %v49 = vld [vmem:[%s1 + $0x90] sm:$0xff]
  %v50 = vld [vmem:[%s1 + $0x98] sm:$0xff]
  %v51 = vld [vmem:[%s1 + $0xa0] sm:$0xff]
  %v52 = vld [vmem:[%s1 + $0xa8] sm:$0xff]
  %v53 = vld [vmem:[%s1 + $0xb0] sm:$0xff]
  %v54 = vld [vmem:[%s1 + $0xb8] sm:$0xff]
  %v55 = vld [vmem:[%s1 + $0xc0] sm:$0xff]
  %v56 = vld [vmem:[%s1 + $0xc8] sm:$0xff]
  %v57 = vld [vmem:[%s1 + $0xd0] sm:$0xff]
  %v58 = vld [vmem:[%s1 + $0xd8] sm:$0xff]
  %v59 = vld [vmem:[%s1 + $0xe0] sm:$0xff]
  %v60 = vld [vmem:[%s1 + $0xe8] sm:$0xff]
  %v61 = vld [vmem:[%s1 + $0xf0] sm:$0xff]
  %v62 = vld [vmem:[%s1 + $0xf8] sm:$0xff]
  %v63 = vld [vmem:[%s1 + $0x100] sm:$0xff]
  %v64 = vld [vmem:[%s1 + $0x108] sm:$0xff]
  %v65 = vld [vmem:[%s1 + $0x110] sm:$0xff]
  %v66 = vld [vmem:[%s1 + $0x118] sm:$0xff]
  %v67 = vld [vmem:[%s1 + $0x120] sm:$0xff]
  %v68 = vld [vmem:[%s1 + $0x128] sm:$0xff]
  %v69 = vld [vmem:[%s1 + $0x130] sm:$0xff]
  %v70 = vld [vmem:[%s1 + $0x138] sm:$0xff]
  %v71 = vld [vmem:[%s1 + $0x140] sm:$0xff]
  %v72 = vld [vmem:[%s1 + $0x148] sm:$0xff]
  %v73 = vld [vmem:[%s1 + $0x150] sm:$0xff]
  %v74 = vld [vmem:[%s1 + $0x158] sm:$0xff]
  %v75 = vld [vmem:[%s1 + $0x160] sm:$0xff]
  %v76 = vld [vmem:[%s1 + $0x168] sm:$0xff]
  %v77 = vld [vmem:[%s1 + $0x170] sm:$0xff]
  %v78 = vld [vmem:[%s1 + $0x178] sm:$0xff]
  %v79 = vld [vmem:[%s1 + $0x180] sm:$0xff]
  %v80 = vld [vmem:[%s1 + $0x188] sm:$0xff]
  %v81 = vld [vmem:[%s1 + $0x190] sm:$0xff]
  %v82 = vld [vmem:[%s1 + $0x198] sm:$0xff]
  %v83 = vld [vmem:[%s1 + $0x1a0] sm:$0xff]
  %v84 = vld [vmem:[%s1 + $0x1a8] sm:$0xff]
  %v85 = vld [vmem:[%s1 + $0x1b0] sm:$0xff]
  %v86 = vld [vmem:[%s1 + $0x1b8] sm:$0xff]
  %v87 = vld [vmem:[%s1 + $0x1c0] sm:$0xff]
  %v88 = vld [vmem:[%s1 + $0x1c8] sm:$0xff]
  %v89 = vld [vmem:[%s1 + $0x1d0] sm:$0xff]
  %v90 = vld [vmem:[%s1 + $0x1d8] sm:$0xff]
  %v91 = vld [vmem:[%s1 + $0x1e0] sm:$0xff]
  %v92 = vld [vmem:[%s1 + $0x1e8] sm:$0xff]
  %v93 = vld [vmem:[%s1 + $0x1f0] sm:$0xff]
  %v94 = vld [vmem:[%s1 + $0x1f8] sm:$0xff]
  %v95 = vld [vmem:[%s3] sm:$0xf]
  %v97 = vlaneseq
  %v98 = vshrl.u32 %v97, 7
  %v99 = vsub.s32 0, %v98
  %v100 = vrot.slane %v95, %v99
  %v101 = vlaneseq
  %v102 = vshrl.u32 %v101, 7
  %v103 = vsub.s32 1, %v102
  %v104 = vrot.slane %v95, %v103
  %v105 = vlaneseq
  %v106 = vshrl.u32 %v105, 7
  %v107 = vsub.s32 2, %v106
  %v108 = vrot.slane %v95, %v107
  %v109 = vlaneseq
  %v110 = vshrl.u32 %v109, 7
  %v111 = vsub.s32 3, %v110
  %v112 = vrot.slane %v95, %v111
  %117 = vmatprep.subr.mxu0 %v32
  %118 = vmatpush1.msra.mxu0 %v31
  %119 = vmatprep.subr.mxu0 %v36
  %120 = vmatpush1.msra.mxu0 %v35
  %121 = vmatprep.subr.mxu0 %v40
  %122 = vmatpush1.msra.mxu0 %v39
  %123 = vmatprep.subr.mxu0 %v44
  %124 = vmatpush1.msra.mxu0 %v43
  %125 = vmatprep.subr.mxu0 %v48
  %126 = vmatpush1.msra.mxu0 %v47
  %127 = vmatprep.subr.mxu0 %v52
  %128 = vmatpush1.msra.mxu0 %v51
  %129 = vmatprep.subr.mxu0 %v56
  %130 = vmatpush1.msra.mxu0 %v55
  %131 = vmatprep.subr.mxu0 %v60
  %132 = vmatpush1.msra.mxu0 %v59
  %133 = vmatprep.subr.mxu0 %v64
  %134 = vmatpush1.msra.mxu0 %v63
  %135 = vmatprep.subr.mxu0 %v68
  %136 = vmatpush1.msra.mxu0 %v67
  %137 = vmatprep.subr.mxu0 %v72
  %138 = vmatpush1.msra.mxu0 %v71
  %139 = vmatprep.subr.mxu0 %v76
  %140 = vmatpush1.msra.mxu0 %v75
  %141 = vmatprep.subr.mxu0 %v80
  %142 = vmatpush1.msra.mxu0 %v79
  %143 = vmatprep.subr.mxu0 %v84
  %144 = vmatpush1.msra.mxu0 %v83
  %145 = vmatprep.subr.mxu0 %v88
  %146 = vmatpush1.msra.mxu0 %v87
  %147 = vmatprep.subr.mxu0 %v92
  %148 = vmatpush1.msra.mxu0 %v91
  %149 = vmatprep.subr.mxu0 0.0
  %150 = vmatpush1.msra.mxu0 0.0
  %151 = vmatprep.subr.mxu0 0.0
  %152 = vmatpush1.msra.mxu0 0.0
  %153 = vmatprep.subr.mxu0 0.0
  %154 = vmatpush1.msra.mxu0 0.0
  %155 = vmatprep.subr.mxu0 0.0
  %156 = vmatpush1.msra.mxu0 0.0
  %157 = vmatprep.subr.mxu0 0.0
  %158 = vmatpush1.msra.mxu0 0.0
  %159 = vmatprep.subr.mxu0 0.0
  %160 = vmatpush1.msra.mxu0 0.0
  %161 = vmatprep.subr.mxu0 0.0
  %162 = vmatpush1.msra.mxu0 0.0
  %163 = vmatprep.subr.mxu0 0.0
  %164 = vmatpush1.msra.mxu0 0.0
  %165 = vmatprep.subr.mxu0 0.0
  %166 = vmatpush1.msra.mxu0 0.0
  %167 = vmatprep.subr.mxu0 0.0
  %168 = vmatpush1.msra.mxu0 0.0
  %169 = vmatprep.subr.mxu0 0.0
  %170 = vmatpush1.msra.mxu0 0.0
  %171 = vmatprep.subr.mxu0 0.0
  %172 = vmatpush1.msra.mxu0 0.0
  %173 = vmatprep.subr.mxu0 0.0
  %174 = vmatpush1.msra.mxu0 0.0
  %175 = vmatprep.subr.mxu0 0.0
  %176 = vmatpush1.msra.mxu0 0.0
  %177 = vmatprep.subr.mxu0 0.0
  %178 = vmatpush1.msra.mxu0 0.0
  %179 = vmatprep.subr.mxu0 0.0
  %180 = vmatpush1.msra.mxu0 0.0
  %181 = vmatprep.mubr.f32.mxu0 0.0
  %182 = vmatmul.mubr.f32.gmra.mrb[0].mxu0 %v23
  %v183 = vpop.f32.mrb[0].mxu0
  %v184 = vadd.f32 %v100, %v183
  %v185 = vpop.f32.mrb[0].mxu0
  %v186 = vadd.f32 %v104, %v185
  %187 = vmatprep.mubr.f32.mxu0 0.0
  %188 = vmatmul.mubr.f32.gmra.mrb[0].mxu0 %v24
  %v189 = vpop.f32.mrb[0].mxu0
  %v190 = vadd.f32 %v100, %v189
  %v191 = vpop.f32.mrb[0].mxu0
  %v192 = vadd.f32 %v104, %v191
  %193 = vmatprep.mubr.f32.mxu0 0.0
  %194 = vmatmul.mubr.f32.gmra.mrb[0].mxu0 %v25
  %v195 = vpop.f32.mrb[0].mxu0
  %v196 = vadd.f32 %v100, %v195
  %v197 = vpop.f32.mrb[0].mxu0
  %v198 = vadd.f32 %v104, %v197
  %199 = vmatprep.mubr.f32.mxu0 0.0
  %200 = vmatmul.mubr.f32.gmra.mrb[0].mxu0 %v26
  %v201 = vpop.f32.mrb[0].mxu0
  %v202 = vadd.f32 %v100, %v201
  %v203 = vpop.f32.mrb[0].mxu0
  %v204 = vadd.f32 %v104, %v203
  %205 = vmatprep.mubr.f32.mxu0 0.0
  %206 = vmatmul.mubr.f32.gmra.mrb[0].mxu0 %v27
  %v207 = vpop.f32.mrb[0].mxu0
  %v208 = vadd.f32 %v100, %v207
  %v209 = vpop.f32.mrb[0].mxu0
  %v210 = vadd.f32 %v104, %v209
  %211 = vmatprep.mubr.f32.mxu0 0.0
  %212 = vmatmul.mubr.f32.gmra.mrb[0].mxu0 %v28
  %v213 = vpop.f32.mrb[0].mxu0
  %v214 = vadd.f32 %v100, %v213
  %v215 = vpop.f32.mrb[0].mxu0
  %v216 = vadd.f32 %v104, %v215
  %217 = vmatprep.mubr.f32.mxu0 0.0
  %218 = vmatmul.mubr.f32.gmra.mrb[0].mxu0 %v29
  %v219 = vpop.f32.mrb[0].mxu0
  %v220 = vadd.f32 %v100, %v219
  %v221 = vpop.f32.mrb[0].mxu0
  %v222 = vadd.f32 %v104, %v221
  %223 = vmatprep.mubr.f32.mxu0 0.0
  %224 = vmatmul.mubr.f32.gmra.mrb[0].mxu0 %v30
  %v225 = vpop.f32.mrb[0].mxu0
  %v226 = vadd.f32 %v100, %v225
  %v227 = vpop.f32.mrb[0].mxu0
  %v228 = vadd.f32 %v104, %v227
  %229 = vdwg.mxu0
  %230 = vmatprep.subr.mxu0 %v34
  %231 = vmatpush1.msra.mxu0 %v33
  %232 = vmatprep.subr.mxu0 %v38
  %233 = vmatpush1.msra.mxu0 %v37
  %234 = vmatprep.subr.mxu0 %v42
  %235 = vmatpush1.msra.mxu0 %v41
  %236 = vmatprep.subr.mxu0 %v46
  %237 = vmatpush1.msra.mxu0 %v45
  %238 = vmatprep.subr.mxu0 %v50
  %239 = vmatpush1.msra.mxu0 %v49
  %240 = vmatprep.subr.mxu0 %v54
  %241 = vmatpush1.msra.mxu0 %v53
  %242 = vmatprep.subr.mxu0 %v58
  %243 = vmatpush1.msra.mxu0 %v57
  %244 = vmatprep.subr.mxu0 %v62
  %245 = vmatpush1.msra.mxu0 %v61
  %246 = vmatprep.subr.mxu0 %v66
  %247 = vmatpush1.msra.mxu0 %v65
  %248 = vmatprep.subr.mxu0 %v70
  %249 = vmatpush1.msra.mxu0 %v69
  %250 = vmatprep.subr.mxu0 %v74
  %251 = vmatpush1.msra.mxu0 %v73
  %252 = vmatprep.subr.mxu0 %v78
  %253 = vmatpush1.msra.mxu0 %v77
  %254 = vmatprep.subr.mxu0 %v82
  %255 = vmatpush1.msra.mxu0 %v81
  %256 = vmatprep.subr.mxu0 %v86
  %257 = vmatpush1.msra.mxu0 %v85
  %258 = vmatprep.subr.mxu0 %v90
  %259 = vmatpush1.msra.mxu0 %v89
  %260 = vmatprep.subr.mxu0 %v94
  %261 = vmatpush1.msra.mxu0 %v93
  %262 = vmatprep.subr.mxu0 0.0
  %263 = vmatpush1.msra.mxu0 0.0
  %264 = vmatprep.subr.mxu0 0.0
  %265 = vmatpush1.msra.mxu0 0.0
  %266 = vmatprep.subr.mxu0 0.0
  %267 = vmatpush1.msra.mxu0 0.0
  %268 = vmatprep.subr.mxu0 0.0
  %269 = vmatpush1.msra.mxu0 0.0
  %270 = vmatprep.subr.mxu0 0.0
  %271 = vmatpush1.msra.mxu0 0.0
  %272 = vmatprep.subr.mxu0 0.0
  %273 = vmatpush1.msra.mxu0 0.0
  %274 = vmatprep.subr.mxu0 0.0
  %275 = vmatpush1.msra.mxu0 0.0
  %276 = vmatprep.subr.mxu0 0.0
  %277 = vmatpush1.msra.mxu0 0.0
  %278 = vmatprep.subr.mxu0 0.0
  %279 = vmatpush1.msra.mxu0 0.0
  %280 = vmatprep.subr.mxu0 0.0
  %281 = vmatpush1.msra.mxu0 0.0
  %282 = vmatprep.subr.mxu0 0.0
  %283 = vmatpush1.msra.mxu0 0.0
  %284 = vmatprep.subr.mxu0 0.0
  %285 = vmatpush1.msra.mxu0 0.0
  %286 = vmatprep.subr.mxu0 0.0
  %287 = vmatpush1.msra.mxu0 0.0
  %288 = vmatprep.subr.mxu0 0.0
  %289 = vmatpush1.msra.mxu0 0.0
  %290 = vmatprep.subr.mxu0 0.0
  %291 = vmatpush1.msra.mxu0 0.0
  %292 = vmatprep.subr.mxu0 0.0
  %293 = vmatpush1.msra.mxu0 0.0
  %294 = vmatprep.mubr.f32.mxu0 0.0
  %295 = vmatmul.mubr.f32.gmra.mrb[0].mxu0 %v23
  %v296 = vpop.f32.mrb[0].mxu0
  %v297 = vadd.f32 %v108, %v296
  %v298 = vpop.f32.mrb[0].mxu0
  %v299 = vadd.f32 %v112, %v298
  %300 = vmatprep.mubr.f32.mxu0 0.0
  %301 = vmatmul.mubr.f32.gmra.mrb[0].mxu0 %v24
  %v302 = vpop.f32.mrb[0].mxu0
  %v303 = vadd.f32 %v108, %v302
  %v304 = vpop.f32.mrb[0].mxu0
  %v305 = vadd.f32 %v112, %v304
  %306 = vmatprep.mubr.f32.mxu0 0.0
  %307 = vmatmul.mubr.f32.gmra.mrb[0].mxu0 %v25
  %v308 = vpop.f32.mrb[0].mxu0
  %v309 = vadd.f32 %v108, %v308
  %v310 = vpop.f32.mrb[0].mxu0
  %v311 = vadd.f32 %v112, %v310
  %312 = vmatprep.mubr.f32.mxu0 0.0
  %313 = vmatmul.mubr.f32.gmra.mrb[0].mxu0 %v26
  %v314 = vpop.f32.mrb[0].mxu0
  %v315 = vadd.f32 %v108, %v314
  %v316 = vpop.f32.mrb[0].mxu0
  %v317 = vadd.f32 %v112, %v316
  %318 = vmatprep.mubr.f32.mxu0 0.0
  %319 = vmatmul.mubr.f32.gmra.mrb[0].mxu0 %v27
  %v320 = vpop.f32.mrb[0].mxu0
  %v321 = vadd.f32 %v108, %v320
  %v322 = vpop.f32.mrb[0].mxu0
  %v323 = vadd.f32 %v112, %v322
  %324 = vmatprep.mubr.f32.mxu0 0.0
  %325 = vmatmul.mubr.f32.gmra.mrb[0].mxu0 %v28
  %v326 = vpop.f32.mrb[0].mxu0
  %v327 = vadd.f32 %v108, %v326
  %v328 = vpop.f32.mrb[0].mxu0
  %v329 = vadd.f32 %v112, %v328
  %330 = vmatprep.mubr.f32.mxu0 0.0
  %331 = vmatmul.mubr.f32.gmra.mrb[0].mxu0 %v29
  %v332 = vpop.f32.mrb[0].mxu0
  %v333 = vadd.f32 %v108, %v332
  %v334 = vpop.f32.mrb[0].mxu0
  %v335 = vadd.f32 %v112, %v334
  %336 = vmatprep.mubr.f32.mxu0 0.0
  %337 = vmatmul.mubr.f32.gmra.mrb[0].mxu0 %v30
  %v338 = vpop.f32.mrb[0].mxu0
  %v339 = vadd.f32 %v108, %v338
  %v340 = vpop.f32.mrb[0].mxu0
  %v341 = vadd.f32 %v112, %v340
  %342 = vdwg.mxu0
  %343 = vst [vmem:[#allocation2] sm:$0xff] %v184
  %344 = vst [vmem:[#allocation2 + $0x8] sm:$0xff] %v186
  %345 = vst [vmem:[#allocation2 + $0x10] sm:$0xff] %v297
  %346 = vst [vmem:[#allocation2 + $0x18] sm:$0xff] %v299
  %347 = vst [vmem:[#allocation2 + $0x20] sm:$0xff] %v190
  %348 = vst [vmem:[#allocation2 + $0x28] sm:$0xff] %v192
  %349 = vst [vmem:[#allocation2 + $0x30] sm:$0xff] %v303
  %350 = vst [vmem:[#allocation2 + $0x38] sm:$0xff] %v305
  %351 = vst [vmem:[#allocation2 + $0x40] sm:$0xff] %v196
  %352 = vst [vmem:[#allocation2 + $0x48] sm:$0xff] %v198
  %353 = vst [vmem:[#allocation2 + $0x50] sm:$0xff] %v309
  %354 = vst [vmem:[#allocation2 + $0x58] sm:$0xff] %v311
  %355 = vst [vmem:[#allocation2 + $0x60] sm:$0xff] %v202
  %356 = vst [vmem:[#allocation2 + $0x68] sm:$0xff] %v204
  %357 = vst [vmem:[#allocation2 + $0x70] sm:$0xff] %v315
  %358 = vst [vmem:[#allocation2 + $0x78] sm:$0xff] %v317
  %359 = vst [vmem:[#allocation2 + $0x80] sm:$0xff] %v208
  %360 = vst [vmem:[#allocation2 + $0x88] sm:$0xff] %v210
  %361 = vst [vmem:[#allocation2 + $0x90] sm:$0xff] %v321
  %362 = vst [vmem:[#allocation2 + $0x98] sm:$0xff] %v323
  %363 = vst [vmem:[#allocation2 + $0xa0] sm:$0xff] %v214
  %364 = vst [vmem:[#allocation2 + $0xa8] sm:$0xff] %v216
  %365 = vst [vmem:[#allocation2 + $0xb0] sm:$0xff] %v327
  %366 = vst [vmem:[#allocation2 + $0xb8] sm:$0xff] %v329
  %367 = vst [vmem:[#allocation2 + $0xc0] sm:$0xff] %v220
  %368 = vst [vmem:[#allocation2 + $0xc8] sm:$0xff] %v222
  %369 = vst [vmem:[#allocation2 + $0xd0] sm:$0xff] %v333
  %370 = vst [vmem:[#allocation2 + $0xd8] sm:$0xff] %v335
  %371 = vst [vmem:[#allocation2 + $0xe0] sm:$0xff] %v226
  %372 = vst [vmem:[#allocation2 + $0xe8] sm:$0xff] %v228
  %373 = vst [vmem:[#allocation2 + $0xf0] sm:$0xff] %v339
  %374 = vst [vmem:[#allocation2 + $0xf8] sm:$0xff] %v341
  %v375 = vld [vmem:[%s2] sm:$0xff]
  %v376 = vld [vmem:[%s2 + $0x8] sm:$0xff]
  %v377 = vld [vmem:[%s2 + $0x10] sm:$0xff]
  %v378 = vld [vmem:[%s2 + $0x18] sm:$0xff]
  %v379 = vld [vmem:[%s2 + $0x20] sm:$0xff]
  %v380 = vld [vmem:[%s2 + $0x28] sm:$0xff]
  %v381 = vld [vmem:[%s2 + $0x30] sm:$0xff]
  %v382 = vld [vmem:[%s2 + $0x38] sm:$0xff]
  %v383 = vld [vmem:[%s2 + $0x40] sm:$0xff]
  %v384 = vld [vmem:[%s2 + $0x48] sm:$0xff]
  %v385 = vld [vmem:[%s2 + $0x50] sm:$0xff]
  %v386 = vld [vmem:[%s2 + $0x58] sm:$0xff]
  %v387 = vld [vmem:[%s2 + $0x60] sm:$0xff]
  %v388 = vld [vmem:[%s2 + $0x68] sm:$0xff]
  %v389 = vld [vmem:[%s2 + $0x70] sm:$0xff]
  %v390 = vld [vmem:[%s2 + $0x78] sm:$0xff]
  %v391 = vld [vmem:[%s2 + $0x80] sm:$0xff]
  %v392 = vld [vmem:[%s2 + $0x88] sm:$0xff]
  %v393 = vld [vmem:[%s2 + $0x90] sm:$0xff]
  %v394 = vld [vmem:[%s2 + $0x98] sm:$0xff]
  %v395 = vld [vmem:[%s2 + $0xa0] sm:$0xff]
  %v396 = vld [vmem:[%s2 + $0xa8] sm:$0xff]
  %v397 = vld [vmem:[%s2 + $0xb0] sm:$0xff]
  %v398 = vld [vmem:[%s2 + $0xb8] sm:$0xff]
  %v399 = vld [vmem:[%s2 + $0xc0] sm:$0xff]
  %v400 = vld [vmem:[%s2 + $0xc8] sm:$0xff]
  %v401 = vld [vmem:[%s2 + $0xd0] sm:$0xff]
  %v402 = vld [vmem:[%s2 + $0xd8] sm:$0xff]
  %v403 = vld [vmem:[%s2 + $0xe0] sm:$0xff]
  %v404 = vld [vmem:[%s2 + $0xe8] sm:$0xff]
  %v405 = vld [vmem:[%s2 + $0xf0] sm:$0xff]
  %v406 = vld [vmem:[%s2 + $0xf8] sm:$0xff]
  %v407 = vld [vmem:[%s2 + $0x100] sm:$0xff]
  %v408 = vld [vmem:[%s2 + $0x108] sm:$0xff]
  %v409 = vld [vmem:[%s2 + $0x110] sm:$0xff]
  %v410 = vld [vmem:[%s2 + $0x118] sm:$0xff]
  %v411 = vld [vmem:[%s2 + $0x120] sm:$0xff]
  %v412 = vld [vmem:[%s2 + $0x128] sm:$0xff]
  %v413 = vld [vmem:[%s2 + $0x130] sm:$0xff]
  %v414 = vld [vmem:[%s2 + $0x138] sm:$0xff]
  %v415 = vld [vmem:[%s2 + $0x140] sm:$0xff]
  %v416 = vld [vmem:[%s2 + $0x148] sm:$0xff]
  %v417 = vld [vmem:[%s2 + $0x150] sm:$0xff]
  %v418 = vld [vmem:[%s2 + $0x158] sm:$0xff]
  %v419 = vld [vmem:[%s2 + $0x160] sm:$0xff]
  %v420 = vld [vmem:[%s2 + $0x168] sm:$0xff]
  %v421 = vld [vmem:[%s2 + $0x170] sm:$0xff]
  %v422 = vld [vmem:[%s2 + $0x178] sm:$0xff]
  %v423 = vld [vmem:[%s2 + $0x180] sm:$0xff]
  %v424 = vld [vmem:[%s2 + $0x188] sm:$0xff]
  %v425 = vld [vmem:[%s2 + $0x190] sm:$0xff]
  %v426 = vld [vmem:[%s2 + $0x198] sm:$0xff]
  %v427 = vld [vmem:[%s2 + $0x1a0] sm:$0xff]
  %v428 = vld [vmem:[%s2 + $0x1a8] sm:$0xff]
  %v429 = vld [vmem:[%s2 + $0x1b0] sm:$0xff]
  %v430 = vld [vmem:[%s2 + $0x1b8] sm:$0xff]
  %v431 = vld [vmem:[%s2 + $0x1c0] sm:$0xff]
  %v432 = vld [vmem:[%s2 + $0x1c8] sm:$0xff]
  %v433 = vld [vmem:[%s2 + $0x1d0] sm:$0xff]
  %v434 = vld [vmem:[%s2 + $0x1d8] sm:$0xff]
  %v435 = vld [vmem:[%s2 + $0x1e0] sm:$0xff]
  %v436 = vld [vmem:[%s2 + $0x1e8] sm:$0xff]
  %v437 = vld [vmem:[%s2 + $0x1f0] sm:$0xff]
  %v438 = vld [vmem:[%s2 + $0x1f8] sm:$0xff]
  %v439 = vld [vmem:[#allocation3] sm:$0xff]
  %v440 = vld [vmem:[#allocation4] sm:$0xff]
  %s441 = smul.u32 0, 4
  %s442 = smul.addr %s441, 8
  %s443 = scalar_lea.vmem [#allocation2], %s442
  %v444 = vld [vmem:[%s443] sm:$0xff]
  %v445 = vld [vmem:[%s443 + $0x8] sm:$0xff]
  %v446 = vld [vmem:[%s443 + $0x10] sm:$0xff]
  %v447 = vld [vmem:[%s443 + $0x18] sm:$0xff]
  %448 = vmatprep.subr.mxu0 %v376
  %449 = vmatpush1.msra.mxu0 %v375
  %450 = vmatprep.subr.mxu0 %v380
  %451 = vmatpush1.msra.mxu0 %v379
  %452 = vmatprep.subr.mxu0 %v384
  %453 = vmatpush1.msra.mxu0 %v383
  %454 = vmatprep.subr.mxu0 %v388
  %455 = vmatpush1.msra.mxu0 %v387
  %456 = vmatprep.subr.mxu0 %v392
  %457 = vmatpush1.msra.mxu0 %v391
  %458 = vmatprep.subr.mxu0 %v396
  %459 = vmatpush1.msra.mxu0 %v395
  %460 = vmatprep.subr.mxu0 %v400
  %461 = vmatpush1.msra.mxu0 %v399
  %462 = vmatprep.subr.mxu0 %v404
  %463 = vmatpush1.msra.mxu0 %v403
  %464 = vmatprep.subr.mxu0 %v408
  %465 = vmatpush1.msra.mxu0 %v407
  %466 = vmatprep.subr.mxu0 %v412
  %467 = vmatpush1.msra.mxu0 %v411
  %468 = vmatprep.subr.mxu0 %v416
  %469 = vmatpush1.msra.mxu0 %v415
  %470 = vmatprep.subr.mxu0 %v420
  %471 = vmatpush1.msra.mxu0 %v419
  %472 = vmatprep.subr.mxu0 %v424
  %473 = vmatpush1.msra.mxu0 %v423
  %474 = vmatprep.subr.mxu0 %v428
  %475 = vmatpush1.msra.mxu0 %v427
  %476 = vmatprep.subr.mxu0 %v432
  %477 = vmatpush1.msra.mxu0 %v431
  %478 = vmatprep.subr.mxu0 %v436
  %479 = vmatpush1.msra.mxu0 %v435
  %480 = vmatprep.subr.mxu0 0.0
  %481 = vmatpush1.msra.mxu0 0.0
  %482 = vmatprep.subr.mxu0 0.0
  %483 = vmatpush1.msra.mxu0 0.0
  %484 = vmatprep.subr.mxu0 0.0
  %485 = vmatpush1.msra.mxu0 0.0
  %486 = vmatprep.subr.mxu0 0.0
  %487 = vmatpush1.msra.mxu0 0.0
  %488 = vmatprep.subr.mxu0 0.0
  %489 = vmatpush1.msra.mxu0 0.0
  %490 = vmatprep.subr.mxu0 0.0
  %491 = vmatpush1.msra.mxu0 0.0
  %492 = vmatprep.subr.mxu0 0.0
  %493 = vmatpush1.msra.mxu0 0.0
  %494 = vmatprep.subr.mxu0 0.0
  %495 = vmatpush1.msra.mxu0 0.0
  %496 = vmatprep.subr.mxu0 0.0
  %497 = vmatpush1.msra.mxu0 0.0
  %498 = vmatprep.subr.mxu0 0.0
  %499 = vmatpush1.msra.mxu0 0.0
  %500 = vmatprep.subr.mxu0 0.0
  %501 = vmatpush1.msra.mxu0 0.0
  %502 = vmatprep.subr.mxu0 0.0
  %503 = vmatpush1.msra.mxu0 0.0
  %504 = vmatprep.subr.mxu0 0.0
  %505 = vmatpush1.msra.mxu0 0.0
  %506 = vmatprep.subr.mxu0 0.0
  %507 = vmatpush1.msra.mxu0 0.0
  %508 = vmatprep.subr.mxu0 0.0
  %509 = vmatpush1.msra.mxu0 0.0
  %510 = vmatprep.subr.mxu0 0.0
  %511 = vmatpush1.msra.mxu0 0.0
  %512 = vmatprep.mubr.f32.mxu0 0.0
  %513 = vmatmul.mubr.f32.gmra.mrb[0].mxu0 %v439
  %v514 = vpop.f32.mrb[0].mxu0
  %v515 = vadd.f32 0.0, %v514
  %v516 = vpop.f32.mrb[0].mxu0
  %v517 = vadd.f32 0.0, %v516
  %518 = vdwg.mxu0
  %519 = vmatprep.subr.mxu0 %v378
  %520 = vmatpush1.msra.mxu0 %v377
  %521 = vmatprep.subr.mxu0 %v382
  %522 = vmatpush1.msra.mxu0 %v381
  %523 = vmatprep.subr.mxu0 %v386
  %524 = vmatpush1.msra.mxu0 %v385
  %525 = vmatprep.subr.mxu0 %v390
  %526 = vmatpush1.msra.mxu0 %v389
  %527 = vmatprep.subr.mxu0 %v394
  %528 = vmatpush1.msra.mxu0 %v393
  %529 = vmatprep.subr.mxu0 %v398
  %530 = vmatpush1.msra.mxu0 %v397
  %531 = vmatprep.subr.mxu0 %v402
  %532 = vmatpush1.msra.mxu0 %v401
  %533 = vmatprep.subr.mxu0 %v406
  %534 = vmatpush1.msra.mxu0 %v405
  %535 = vmatprep.subr.mxu0 %v410
  %536 = vmatpush1.msra.mxu0 %v409
  %537 = vmatprep.subr.mxu0 %v414
  %538 = vmatpush1.msra.mxu0 %v413
  %539 = vmatprep.subr.mxu0 %v418
  %540 = vmatpush1.msra.mxu0 %v417
  %541 = vmatprep.subr.mxu0 %v422
  %542 = vmatpush1.msra.mxu0 %v421
  %543 = vmatprep.subr.mxu0 %v426
  %544 = vmatpush1.msra.mxu0 %v425
  %545 = vmatprep.subr.mxu0 %v430
  %546 = vmatpush1.msra.mxu0 %v429
  %547 = vmatprep.subr.mxu0 %v434
  %548 = vmatpush1.msra.mxu0 %v433
  %549 = vmatprep.subr.mxu0 %v438
  %550 = vmatpush1.msra.mxu0 %v437
  %551 = vmatprep.subr.mxu0 0.0
  %552 = vmatpush1.msra.mxu0 0.0
  %553 = vmatprep.subr.mxu0 0.0
  %554 = vmatpush1.msra.mxu0 0.0
  %555 = vmatprep.subr.mxu0 0.0
  %556 = vmatpush1.msra.mxu0 0.0
  %557 = vmatprep.subr.mxu0 0.0
  %558 = vmatpush1.msra.mxu0 0.0
  %559 = vmatprep.subr.mxu0 0.0
  %560 = vmatpush1.msra.mxu0 0.0
  %561 = vmatprep.subr.mxu0 0.0
  %562 = vmatpush1.msra.mxu0 0.0
  %563 = vmatprep.subr.mxu0 0.0
  %564 = vmatpush1.msra.mxu0 0.0
  %565 = vmatprep.subr.mxu0 0.0
  %566 = vmatpush1.msra.mxu0 0.0
  %567 = vmatprep.subr.mxu0 0.0
  %568 = vmatpush1.msra.mxu0 0.0
  %569 = vmatprep.subr.mxu0 0.0
  %570 = vmatpush1.msra.mxu0 0.0
  %571 = vmatprep.subr.mxu0 0.0
  %572 = vmatpush1.msra.mxu0 0.0
  %573 = vmatprep.subr.mxu0 0.0
  %574 = vmatpush1.msra.mxu0 0.0
  %575 = vmatprep.subr.mxu0 0.0
  %576 = vmatpush1.msra.mxu0 0.0
  %577 = vmatprep.subr.mxu0 0.0
  %578 = vmatpush1.msra.mxu0 0.0
  %579 = vmatprep.subr.mxu0 0.0
  %580 = vmatpush1.msra.mxu0 0.0
  %581 = vmatprep.subr.mxu0 0.0
  %582 = vmatpush1.msra.mxu0 0.0
  %583 = vmatprep.mubr.f32.mxu0 0.0
  %584 = vmatmul.mubr.f32.gmra.mrb[0].mxu0 %v439
  %v585 = vpop.f32.mrb[0].mxu0
  %v586 = vadd.f32 0.0, %v585
  %v587 = vpop.f32.mrb[0].mxu0
  %v588 = vadd.f32 0.0, %v587
  %589 = vdwg.mxu0
  %v590 = vadd.f32 %v444, %v515
  %v591 = vadd.f32 %v445, %v517
  %v592 = vadd.f32 %v446, %v586
  %v593 = vadd.f32 %v447, %v588
  %v594 = vxor.u32 %v590, 2147483648
  %v595 = vmul.f32 %v594, 1.442695
  %v596 = vpow.pop %v595
  %v597 = vadd.f32 %v596, 1.0
  %v598 = vrcp.pop %v597
  %v599 = vmul.f32 1.0, %v598
  %v600 = vxor.u32 %v591, 2147483648
  %v601 = vmul.f32 %v600, 1.442695
  %v602 = vpow.pop %v601
  %v603 = vadd.f32 %v602, 1.0
  %v604 = vrcp.pop %v603
  %v605 = vmul.f32 1.0, %v604
  %v606 = vtanh.pop %v592
  %v607 = vxor.u32 %v593, 2147483648
  %v608 = vmul.f32 %v607, 1.442695
  %v609 = vpow.pop %v608
  %v610 = vadd.f32 %v609, 1.0
  %v611 = vrcp.pop %v610
  %v612 = vmul.f32 1.0, %v611
  %v613 = vmul.f32 %v605, %v440
  %v614 = vmul.f32 %v599, %v606
  %v615 = vadd.f32 %v613, %v614
  %v616 = vtanh.pop %v615
  %v617 = vmul.f32 %v612, %v616
  %618 = vst [vmem:[%s4] sm:$0xff] %v617
  %s619 = smul.u32 1, 4
  %s620 = smul.addr %s619, 8
  %s621 = scalar_lea.vmem [#allocation2], %s620
  %v622 = vld [vmem:[%s621] sm:$0xff]
  %v623 = vld [vmem:[%s621 + $0x8] sm:$0xff]
  %v624 = vld [vmem:[%s621 + $0x10] sm:$0xff]
  %v625 = vld [vmem:[%s621 + $0x18] sm:$0xff]
  %626 = vmatprep.subr.mxu0 %v376
  %627 = vmatpush1.msra.mxu0 %v375
  %628 = vmatprep.subr.mxu0 %v380
  %629 = vmatpush1.msra.mxu0 %v379
  %630 = vmatprep.subr.mxu0 %v384
  %631 = vmatpush1.msra.mxu0 %v383
  %632 = vmatprep.subr.mxu0 %v388
  %633 = vmatpush1.msra.mxu0 %v387
  %634 = vmatprep.subr.mxu0 %v392
  %635 = vmatpush1.msra.mxu0 %v391
  %636 = vmatprep.subr.mxu0 %v396
  %637 = vmatpush1.msra.mxu0 %v395
  %638 = vmatprep.subr.mxu0 %v400
  %639 = vmatpush1.msra.mxu0 %v399
  %640 = vmatprep.subr.mxu0 %v404
  %641 = vmatpush1.msra.mxu0 %v403
  %642 = vmatprep.subr.mxu0 %v408
  %643 = vmatpush1.msra.mxu0 %v407
  %644 = vmatprep.subr.mxu0 %v412
  %645 = vmatpush1.msra.mxu0 %v411
  %646 = vmatprep.subr.mxu0 %v416
  %647 = vmatpush1.msra.mxu0 %v415
  %648 = vmatprep.subr.mxu0 %v420
  %649 = vmatpush1.msra.mxu0 %v419
  %650 = vmatprep.subr.mxu0 %v424
  %651 = vmatpush1.msra.mxu0 %v423
  %652 = vmatprep.subr.mxu0 %v428
  %653 = vmatpush1.msra.mxu0 %v427
  %654 = vmatprep.subr.mxu0 %v432
  %655 = vmatpush1.msra.mxu0 %v431
  %656 = vmatprep.subr.mxu0 %v436
  %657 = vmatpush1.msra.mxu0 %v435
  %658 = vmatprep.subr.mxu0 0.0
  %659 = vmatpush1.msra.mxu0 0.0
  %660 = vmatprep.subr.mxu0 0.0
  %661 = vmatpush1.msra.mxu0 0.0
  %662 = vmatprep.subr.mxu0 0.0
  %663 = vmatpush1.msra.mxu0 0.0
  %664 = vmatprep.subr.mxu0 0.0
  %665 = vmatpush1.msra.mxu0 0.0
  %666 = vmatprep.subr.mxu0 0.0
  %667 = vmatpush1.msra.mxu0 0.0
  %668 = vmatprep.subr.mxu0 0.0
  %669 = vmatpush1.msra.mxu0 0.0
  %670 = vmatprep.subr.mxu0 0.0
  %671 = vmatpush1.msra.mxu0 0.0
  %672 = vmatprep.subr.mxu0 0.0
  %673 = vmatpush1.msra.mxu0 0.0
  %674 = vmatprep.subr.mxu0 0.0
  %675 = vmatpush1.msra.mxu0 0.0
  %676 = vmatprep.subr.mxu0 0.0
  %677 = vmatpush1.msra.mxu0 0.0
  %678 = vmatprep.subr.mxu0 0.0
  %679 = vmatpush1.msra.mxu0 0.0
  %680 = vmatprep.subr.mxu0 0.0
  %681 = vmatpush1.msra.mxu0 0.0
  %682 = vmatprep.subr.mxu0 0.0
  %683 = vmatpush1.msra.mxu0 0.0
  %684 = vmatprep.subr.mxu0 0.0
  %685 = vmatpush1.msra.mxu0 0.0
  %686 = vmatprep.subr.mxu0 0.0
  %687 = vmatpush1.msra.mxu0 0.0
  %688 = vmatprep.subr.mxu0 0.0
  %689 = vmatpush1.msra.mxu0 0.0
  %690 = vmatprep.mubr.f32.mxu0 0.0
  %691 = vmatmul.mubr.f32.gmra.mrb[0].mxu0 %v617
  %v692 = vpop.f32.mrb[0].mxu0
  %v693 = vadd.f32 0.0, %v692
  %v694 = vpop.f32.mrb[0].mxu0
  %v695 = vadd.f32 0.0, %v694
  %696 = vdwg.mxu0
  %697 = vmatprep.subr.mxu0 %v378
  %698 = vmatpush1.msra.mxu0 %v377
  %699 = vmatprep.subr.mxu0 %v382
  %700 = vmatpush1.msra.mxu0 %v381
  %701 = vmatprep.subr.mxu0 %v386
  %702 = vmatpush1.msra.mxu0 %v385
  %703 = vmatprep.subr.mxu0 %v390
  %704 = vmatpush1.msra.mxu0 %v389
  %705 = vmatprep.subr.mxu0 %v394
  %706 = vmatpush1.msra.mxu0 %v393
  %707 = vmatprep.subr.mxu0 %v398
  %708 = vmatpush1.msra.mxu0 %v397
  %709 = vmatprep.subr.mxu0 %v402
  %710 = vmatpush1.msra.mxu0 %v401
  %711 = vmatprep.subr.mxu0 %v406
  %712 = vmatpush1.msra.mxu0 %v405
  %713 = vmatprep.subr.mxu0 %v410
  %714 = vmatpush1.msra.mxu0 %v409
  %715 = vmatprep.subr.mxu0 %v414
  %716 = vmatpush1.msra.mxu0 %v413
  %717 = vmatprep.subr.mxu0 %v418
  %718 = vmatpush1.msra.mxu0 %v417
  %719 = vmatprep.subr.mxu0 %v422
  %720 = vmatpush1.msra.mxu0 %v421
  %721 = vmatprep.subr.mxu0 %v426
  %722 = vmatpush1.msra.mxu0 %v425
  %723 = vmatprep.subr.mxu0 %v430
  %724 = vmatpush1.msra.mxu0 %v429
  %725 = vmatprep.subr.mxu0 %v434
  %726 = vmatpush1.msra.mxu0 %v433
  %727 = vmatprep.subr.mxu0 %v438
  %728 = vmatpush1.msra.mxu0 %v437
  %729 = vmatprep.subr.mxu0 0.0
  %730 = vmatpush1.msra.mxu0 0.0
  %731 = vmatprep.subr.mxu0 0.0
  %732 = vmatpush1.msra.mxu0 0.0
  %733 = vmatprep.subr.mxu0 0.0
  %734 = vmatpush1.msra.mxu0 0.0
  %735 = vmatprep.subr.mxu0 0.0
  %736 = vmatpush1.msra.mxu0 0.0
  %737 = vmatprep.subr.mxu0 0.0
  %738 = vmatpush1.msra.mxu0 0.0
  %739 = vmatprep.subr.mxu0 0.0
  %740 = vmatpush1.msra.mxu0 0.0
  %741 = vmatprep.subr.mxu0 0.0
  %742 = vmatpush1.msra.mxu0 0.0
  %743 = vmatprep.subr.mxu0 0.0
  %744 = vmatpush1.msra.mxu0 0.0
  %745 = vmatprep.subr.mxu0 0.0
  %746 = vmatpush1.msra.mxu0 0.0
  %747 = vmatprep.subr.mxu0 0.0
  %748 = vmatpush1.msra.mxu0 0.0
  %749 = vmatprep.subr.mxu0 0.0
  %750 = vmatpush1.msra.mxu0 0.0
  %751 = vmatprep.subr.mxu0 0.0
  %752 = vmatpush1.msra.mxu0 0.0
  %753 = vmatprep.subr.mxu0 0.0
  %754 = vmatpush1.msra.mxu0 0.0
  %755 = vmatprep.subr.mxu0 0.0
  %756 = vmatpush1.msra.mxu0 0.0
  %757 = vmatprep.subr.mxu0 0.0
  %758 = vmatpush1.msra.mxu0 0.0
  %759 = vmatprep.subr.mxu0 0.0
  %760 = vmatpush1.msra.mxu0 0.0
  %761 = vmatprep.mubr.f32.mxu0 0.0
  %762 = vmatmul.mubr.f32.gmra.mrb[0].mxu0 %v617
  %v763 = vpop.f32.mrb[0].mxu0
  %v764 = vadd.f32 0.0, %v763
  %v765 = vpop.f32.mrb[0].mxu0
  %v766 = vadd.f32 0.0, %v765
  %767 = vdwg.mxu0
  %v768 = vadd.f32 %v622, %v693
  %v769 = vadd.f32 %v623, %v695
  %v770 = vadd.f32 %v624, %v764
  %v771 = vadd.f32 %v625, %v766
  %v772 = vxor.u32 %v768, 2147483648
  %v773 = vmul.f32 %v772, 1.442695
  %v774 = vpow.pop %v773
  %v775 = vadd.f32 %v774, 1.0
  %v776 = vrcp.pop %v775
  %v777 = vmul.f32 1.0, %v776
  %v778 = vxor.u32 %v769, 2147483648
  %v779 = vmul.f32 %v778, 1.442695
  %v780 = vpow.pop %v779
  %v781 = vadd.f32 %v780, 1.0
  %v782 = vrcp.pop %v781
  %v783 = vmul.f32 1.0, %v782
  %v784 = vtanh.pop %v770
  %v785 = vxor.u32 %v771, 2147483648
  %v786 = vmul.f32 %v785, 1.442695
  %v787 = vpow.pop %v786
  %v788 = vadd.f32 %v787, 1.0
  %v789 = vrcp.pop %v788
  %v790 = vmul.f32 1.0, %v789
  %v791 = vmul.f32 %v783, %v615
  %v792 = vmul.f32 %v777, %v784
  %v793 = vadd.f32 %v791, %v792
  %v794 = vtanh.pop %v793
  %v795 = vmul.f32 %v790, %v794
  %s796 = scalar_lea.vmem %s4, 8
  %797 = vst [vmem:[%s796] sm:$0xff] %v795
  %s798 = smul.u32 2, 4
  %s799 = smul.addr %s798, 8
  %s800 = scalar_lea.vmem [#allocation2], %s799
  %v801 = vld [vmem:[%s800] sm:$0xff]
  %v802 = vld [vmem:[%s800 + $0x8] sm:$0xff]
  %v803 = vld [vmem:[%s800 + $0x10] sm:$0xff]
  %v804 = vld [vmem:[%s800 + $0x18] sm:$0xff]
  %805 = vmatprep.subr.mxu0 %v376
  %806 = vmatpush1.msra.mxu0 %v375
  %807 = vmatprep.subr.mxu0 %v380
  %808 = vmatpush1.msra.mxu0 %v379
  %809 = vmatprep.subr.mxu0 %v384
  %810 = vmatpush1.msra.mxu0 %v383
  %811 = vmatprep.subr.mxu0 %v388
  %812 = vmatpush1.msra.mxu0 %v387
  %813 = vmatprep.subr.mxu0 %v392
  %814 = vmatpush1.msra.mxu0 %v391
  %815 = vmatprep.subr.mxu0 %v396
  %816 = vmatpush1.msra.mxu0 %v395
  %817 = vmatprep.subr.mxu0 %v400
  %818 = vmatpush1.msra.mxu0 %v399
  %819 = vmatprep.subr.mxu0 %v404
  %820 = vmatpush1.msra.mxu0 %v403
  %821 = vmatprep.subr.mxu0 %v408
  %822 = vmatpush1.msra.mxu0 %v407
  %823 = vmatprep.subr.mxu0 %v412
  %824 = vmatpush1.msra.mxu0 %v411
  %825 = vmatprep.subr.mxu0 %v416
  %826 = vmatpush1.msra.mxu0 %v415
  %827 = vmatprep.subr.mxu0 %v420
  %828 = vmatpush1.msra.mxu0 %v419
  %829 = vmatprep.subr.mxu0 %v424
  %830 = vmatpush1.msra.mxu0 %v423
  %831 = vmatprep.subr.mxu0 %v428
  %832 = vmatpush1.msra.mxu0 %v427
  %833 = vmatprep.subr.mxu0 %v432
  %834 = vmatpush1.msra.mxu0 %v431
  %835 = vmatprep.subr.mxu0 %v436
  %836 = vmatpush1.msra.mxu0 %v435
  %837 = vmatprep.subr.mxu0 0.0
  %838 = vmatpush1.msra.mxu0 0.0
  %839 = vmatprep.subr.mxu0 0.0
  %840 = vmatpush1.msra.mxu0 0.0
  %841 = vmatprep.subr.mxu0 0.0
  %842 = vmatpush1.msra.mxu0 0.0
  %843 = vmatprep.subr.mxu0 0.0
  %844 = vmatpush1.msra.mxu0 0.0
  %845 = vmatprep.subr.mxu0 0.0
  %846 = vmatpush1.msra.mxu0 0.0
  %847 = vmatprep.subr.mxu0 0.0
  %848 = vmatpush1.msra.mxu0 0.0
  %849 = vmatprep.subr.mxu0 0.0
  %850 = vmatpush1.msra.mxu0 0.0
  %851 = vmatprep.subr.mxu0 0.0
  %852 = vmatpush1.msra.mxu0 0.0
  %853 = vmatprep.subr.mxu0 0.0
  %854 = vmatpush1.msra.mxu0 0.0
  %855 = vmatprep.subr.mxu0 0.0
  %856 = vmatpush1.msra.mxu0 0.0
  %857 = vmatprep.subr.mxu0 0.0
  %858 = vmatpush1.msra.mxu0 0.0
  %859 = vmatprep.subr.mxu0 0.0
  %860 = vmatpush1.msra.mxu0 0.0
  %861 = vmatprep.subr.mxu0 0.0
  %862 = vmatpush1.msra.mxu0 0.0
  %863 = vmatprep.subr.mxu0 0.0
  %864 = vmatpush1.msra.mxu0 0.0
  %865 = vmatprep.subr.mxu0 0.0
  %866 = vmatpush1.msra.mxu0 0.0
  %867 = vmatprep.subr.mxu0 0.0
  %868 = vmatpush1.msra.mxu0 0.0
  %869 = vmatprep.mubr.f32.mxu0 0.0
  %870 = vmatmul.mubr.f32.gmra.mrb[0].mxu0 %v795
  %v871 = vpop.f32.mrb[0].mxu0
  %v872 = vadd.f32 0.0, %v871
  %v873 = vpop.f32.mrb[0].mxu0
  %v874 = vadd.f32 0.0, %v873
  %875 = vdwg.mxu0
  %876 = vmatprep.subr.mxu0 %v378
  %877 = vmatpush1.msra.mxu0 %v377
  %878 = vmatprep.subr.mxu0 %v382
  %879 = vmatpush1.msra.mxu0 %v381
  %880 = vmatprep.subr.mxu0 %v386
  %881 = vmatpush1.msra.mxu0 %v385
  %882 = vmatprep.subr.mxu0 %v390
  %883 = vmatpush1.msra.mxu0 %v389
  %884 = vmatprep.subr.mxu0 %v394
  %885 = vmatpush1.msra.mxu0 %v393
  %886 = vmatprep.subr.mxu0 %v398
  %887 = vmatpush1.msra.mxu0 %v397
  %888 = vmatprep.subr.mxu0 %v402
  %889 = vmatpush1.msra.mxu0 %v401
  %890 = vmatprep.subr.mxu0 %v406
  %891 = vmatpush1.msra.mxu0 %v405
  %892 = vmatprep.subr.mxu0 %v410
  %893 = vmatpush1.msra.mxu0 %v409
  %894 = vmatprep.subr.mxu0 %v414
  %895 = vmatpush1.msra.mxu0 %v413
  %896 = vmatprep.subr.mxu0 %v418
  %897 = vmatpush1.msra.mxu0 %v417
  %898 = vmatprep.subr.mxu0 %v422
  %899 = vmatpush1.msra.mxu0 %v421
  %900 = vmatprep.subr.mxu0 %v426
  %901 = vmatpush1.msra.mxu0 %v425
  %902 = vmatprep.subr.mxu0 %v430
  %903 = vmatpush1.msra.mxu0 %v429
  %904 = vmatprep.subr.mxu0 %v434
  %905 = vmatpush1.msra.mxu0 %v433
  %906 = vmatprep.subr.mxu0 %v438
  %907 = vmatpush1.msra.mxu0 %v437
  %908 = vmatprep.subr.mxu0 0.0
  %909 = vmatpush1.msra.mxu0 0.0
  %910 = vmatprep.subr.mxu0 0.0
  %911 = vmatpush1.msra.mxu0 0.0
  %912 = vmatprep.subr.mxu0 0.0
  %913 = vmatpush1.msra.mxu0 0.0
  %914 = vmatprep.subr.mxu0 0.0
  %915 = vmatpush1.msra.mxu0 0.0
  %916 = vmatprep.subr.mxu0 0.0
  %917 = vmatpush1.msra.mxu0 0.0
  %918 = vmatprep.subr.mxu0 0.0
  %919 = vmatpush1.msra.mxu0 0.0
  %920 = vmatprep.subr.mxu0 0.0
  %921 = vmatpush1.msra.mxu0 0.0
  %922 = vmatprep.subr.mxu0 0.0
  %923 = vmatpush1.msra.mxu0 0.0
  %924 = vmatprep.subr.mxu0 0.0
  %925 = vmatpush1.msra.mxu0 0.0
  %926 = vmatprep.subr.mxu0 0.0
  %927 = vmatpush1.msra.mxu0 0.0
  %928 = vmatprep.subr.mxu0 0.0
  %929 = vmatpush1.msra.mxu0 0.0
  %930 = vmatprep.subr.mxu0 0.0
  %931 = vmatpush1.msra.mxu0 0.0
  %932 = vmatprep.subr.mxu0 0.0
  %933 = vmatpush1.msra.mxu0 0.0
  %934 = vmatprep.subr.mxu0 0.0
  %935 = vmatpush1.msra.mxu0 0.0
  %936 = vmatprep.subr.mxu0 0.0
  %937 = vmatpush1.msra.mxu0 0.0
  %938 = vmatprep.subr.mxu0 0.0
  %939 = vmatpush1.msra.mxu0 0.0
  %940 = vmatprep.mubr.f32.mxu0 0.0
  %941 = vmatmul.mubr.f32.gmra.mrb[0].mxu0 %v795
  %v942 = vpop.f32.mrb[0].mxu0
  %v943 = vadd.f32 0.0, %v942
  %v944 = vpop.f32.mrb[0].mxu0
  %v945 = vadd.f32 0.0, %v944
  %946 = vdwg.mxu0
  %v947 = vadd.f32 %v801, %v872
  %v948 = vadd.f32 %v802, %v874
  %v949 = vadd.f32 %v803, %v943
  %v950 = vadd.f32 %v804, %v945
  %v951 = vxor.u32 %v947, 2147483648
  %v952 = vmul.f32 %v951, 1.442695
  %v953 = vpow.pop %v952
  %v954 = vadd.f32 %v953, 1.0
  %v955 = vrcp.pop %v954
  %v956 = vmul.f32 1.0, %v955
  %v957 = vxor.u32 %v948, 2147483648
  %v958 = vmul.f32 %v957, 1.442695
  %v959 = vpow.pop %v958
  %v960 = vadd.f32 %v959, 1.0
  %v961 = vrcp.pop %v960
  %v962 = vmul.f32 1.0, %v961
  %v963 = vtanh.pop %v949
  %v964 = vxor.u32 %v950, 2147483648
  %v965 = vmul.f32 %v964, 1.442695
  %v966 = vpow.pop %v965
  %v967 = vadd.f32 %v966, 1.0
  %v968 = vrcp.pop %v967
  %v969 = vmul.f32 1.0, %v968
  %v970 = vmul.f32 %v962, %v793
  %v971 = vmul.f32 %v956, %v963
  %v972 = vadd.f32 %v970, %v971
  %v973 = vtanh.pop %v972
  %v974 = vmul.f32 %v969, %v973
  %s975 = scalar_lea.vmem %s4, 16
  %976 = vst [vmem:[%s975] sm:$0xff] %v974
  %s977 = smul.u32 3, 4
  %s978 = smul.addr %s977, 8
  %s979 = scalar_lea.vmem [#allocation2], %s978
  %v980 = vld [vmem:[%s979] sm:$0xff]
  %v981 = vld [vmem:[%s979 + $0x8] sm:$0xff]
  %v982 = vld [vmem:[%s979 + $0x10] sm:$0xff]
  %v983 = vld [vmem:[%s979 + $0x18] sm:$0xff]
  %984 = vmatprep.subr.mxu0 %v376
  %985 = vmatpush1.msra.mxu0 %v375
  %986 = vmatprep.subr.mxu0 %v380
  %987 = vmatpush1.msra.mxu0 %v379
  %988 = vmatprep.subr.mxu0 %v384
  %989 = vmatpush1.msra.mxu0 %v383
  %990 = vmatprep.subr.mxu0 %v388
  %991 = vmatpush1.msra.mxu0 %v387
  %992 = vmatprep.subr.mxu0 %v392
  %993 = vmatpush1.msra.mxu0 %v391
  %994 = vmatprep.subr.mxu0 %v396
  %995 = vmatpush1.msra.mxu0 %v395
  %996 = vmatprep.subr.mxu0 %v400
  %997 = vmatpush1.msra.mxu0 %v399
  %998 = vmatprep.subr.mxu0 %v404
  %999 = vmatpush1.msra.mxu0 %v403
  %1000 = vmatprep.subr.mxu0 %v408
  %1001 = vmatpush1.msra.mxu0 %v407
  %1002 = vmatprep.subr.mxu0 %v412
  %1003 = vmatpush1.msra.mxu0 %v411
  %1004 = vmatprep.subr.mxu0 %v416
  %1005 = vmatpush1.msra.mxu0 %v415
  %1006 = vmatprep.subr.mxu0 %v420
  %1007 = vmatpush1.msra.mxu0 %v419
  %1008 = vmatprep.subr.mxu0 %v424
  %1009 = vmatpush1.msra.mxu0 %v423
  %1010 = vmatprep.subr.mxu0 %v428
  %1011 = vmatpush1.msra.mxu0 %v427
  %1012 = vmatprep.subr.mxu0 %v432
  %1013 = vmatpush1.msra.mxu0 %v431
  %1014 = vmatprep.subr.mxu0 %v436
  %1015 = vmatpush1.msra.mxu0 %v435
  %1016 = vmatprep.subr.mxu0 0.0
  %1017 = vmatpush1.msra.mxu0 0.0
  %1018 = vmatprep.subr.mxu0 0.0
  %1019 = vmatpush1.msra.mxu0 0.0
  %1020 = vmatprep.subr.mxu0 0.0
  %1021 = vmatpush1.msra.mxu0 0.0
  %1022 = vmatprep.subr.mxu0 0.0
  %1023 = vmatpush1.msra.mxu0 0.0
  %1024 = vmatprep.subr.mxu0 0.0
  %1025 = vmatpush1.msra.mxu0 0.0
  %1026 = vmatprep.subr.mxu0 0.0
  %1027 = vmatpush1.msra.mxu0 0.0
  %1028 = vmatprep.subr.mxu0 0.0
  %1029 = vmatpush1.msra.mxu0 0.0
  %1030 = vmatprep.subr.mxu0 0.0
  %1031 = vmatpush1.msra.mxu0 0.0
  %1032 = vmatprep.subr.mxu0 0.0
  %1033 = vmatpush1.msra.mxu0 0.0
  %1034 = vmatprep.subr.mxu0 0.0
  %1035 = vmatpush1.msra.mxu0 0.0
  %1036 = vmatprep.subr.mxu0 0.0
  %1037 = vmatpush1.msra.mxu0 0.0
  %1038 = vmatprep.subr.mxu0 0.0
  %1039 = vmatpush1.msra.mxu0 0.0
  %1040 = vmatprep.subr.mxu0 0.0
  %1041 = vmatpush1.msra.mxu0 0.0
  %1042 = vmatprep.subr.mxu0 0.0
  %1043 = vmatpush1.msra.mxu0 0.0
  %1044 = vmatprep.subr.mxu0 0.0
  %1045 = vmatpush1.msra.mxu0 0.0
  %1046 = vmatprep.subr.mxu0 0.0
  %1047 = vmatpush1.msra.mxu0 0.0
  %1048 = vmatprep.mubr.f32.mxu0 0.0
  %1049 = vmatmul.mubr.f32.gmra.mrb[0].mxu0 %v974
  %v1050 = vpop.f32.mrb[0].mxu0
  %v1051 = vadd.f32 0.0, %v1050
  %v1052 = vpop.f32.mrb[0].mxu0
  %v1053 = vadd.f32 0.0, %v1052
  %1054 = vdwg.mxu0
  %1055 = vmatprep.subr.mxu0 %v378
  %1056 = vmatpush1.msra.mxu0 %v377
  %1057 = vmatprep.subr.mxu0 %v382
  %1058 = vmatpush1.msra.mxu0 %v381
  %1059 = vmatprep.subr.mxu0 %v386
  %1060 = vmatpush1.msra.mxu0 %v385
  %1061 = vmatprep.subr.mxu0 %v390
  %1062 = vmatpush1.msra.mxu0 %v389
  %1063 = vmatprep.subr.mxu0 %v394
  %1064 = vmatpush1.msra.mxu0 %v393
  %1065 = vmatprep.subr.mxu0 %v398
  %1066 = vmatpush1.msra.mxu0 %v397
  %1067 = vmatprep.subr.mxu0 %v402
  %1068 = vmatpush1.msra.mxu0 %v401
  %1069 = vmatprep.subr.mxu0 %v406
  %1070 = vmatpush1.msra.mxu0 %v405
  %1071 = vmatprep.subr.mxu0 %v410
  %1072 = vmatpush1.msra.mxu0 %v409
  %1073 = vmatprep.subr.mxu0 %v414
  %1074 = vmatpush1.msra.mxu0 %v413
  %1075 = vmatprep.subr.mxu0 %v418
  %1076 = vmatpush1.msra.mxu0 %v417
  %1077 = vmatprep.subr.mxu0 %v422
  %1078 = vmatpush1.msra.mxu0 %v421
  %1079 = vmatprep.subr.mxu0 %v426
  %1080 = vmatpush1.msra.mxu0 %v425
  %1081 = vmatprep.subr.mxu0 %v430
  %1082 = vmatpush1.msra.mxu0 %v429
  %1083 = vmatprep.subr.mxu0 %v434
  %1084 = vmatpush1.msra.mxu0 %v433
  %1085 = vmatprep.subr.mxu0 %v438
  %1086 = vmatpush1.msra.mxu0 %v437
  %1087 = vmatprep.subr.mxu0 0.0
  %1088 = vmatpush1.msra.mxu0 0.0
  %1089 = vmatprep.subr.mxu0 0.0
  %1090 = vmatpush1.msra.mxu0 0.0
  %1091 = vmatprep.subr.mxu0 0.0
  %1092 = vmatpush1.msra.mxu0 0.0
  %1093 = vmatprep.subr.mxu0 0.0
  %1094 = vmatpush1.msra.mxu0 0.0
  %1095 = vmatprep.subr.mxu0 0.0
  %1096 = vmatpush1.msra.mxu0 0.0
  %1097 = vmatprep.subr.mxu0 0.0
  %1098 = vmatpush1.msra.mxu0 0.0
  %1099 = vmatprep.subr.mxu0 0.0
  %1100 = vmatpush1.msra.mxu0 0.0
  %1101 = vmatprep.subr.mxu0 0.0
  %1102 = vmatpush1.msra.mxu0 0.0
  %1103 = vmatprep.subr.mxu0 0.0
  %1104 = vmatpush1.msra.mxu0 0.0
  %1105 = vmatprep.subr.mxu0 0.0
  %1106 = vmatpush1.msra.mxu0 0.0
  %1107 = vmatprep.subr.mxu0 0.0
  %1108 = vmatpush1.msra.mxu0 0.0
  %1109 = vmatprep.subr.mxu0 0.0
  %1110 = vmatpush1.msra.mxu0 0.0
  %1111 = vmatprep.subr.mxu0 0.0
  %1112 = vmatpush1.msra.mxu0 0.0
  %1113 = vmatprep.subr.mxu0 0.0
  %1114 = vmatpush1.msra.mxu0 0.0
  %1115 = vmatprep.subr.mxu0 0.0
  %1116 = vmatpush1.msra.mxu0 0.0
  %1117 = vmatprep.subr.mxu0 0.0
  %1118 = vmatpush1.msra.mxu0 0.0
  %1119 = vmatprep.mubr.f32.mxu0 0.0
  %1120 = vmatmul.mubr.f32.gmra.mrb[0].mxu0 %v974
  %v1121 = vpop.f32.mrb[0].mxu0
  %v1122 = vadd.f32 0.0, %v1121
  %v1123 = vpop.f32.mrb[0].mxu0
  %v1124 = vadd.f32 0.0, %v1123
  %1125 = vdwg.mxu0
  %v1126 = vadd.f32 %v980, %v1051
  %v1127 = vadd.f32 %v981, %v1053
  %v1128 = vadd.f32 %v982, %v1122
  %v1129 = vadd.f32 %v983, %v1124
  %v1130 = vxor.u32 %v1126, 2147483648
  %v1131 = vmul.f32 %v1130, 1.442695
  %v1132 = vpow.pop %v1131
  %v1133 = vadd.f32 %v1132, 1.0
  %v1134 = vrcp.pop %v1133
  %v1135 = vmul.f32 1.0, %v1134
  %v1136 = vxor.u32 %v1127, 2147483648
  %v1137 = vmul.f32 %v1136, 1.442695
  %v1138 = vpow.pop %v1137
  %v1139 = vadd.f32 %v1138, 1.0
  %v1140 = vrcp.pop %v1139
  %v1141 = vmul.f32 1.0, %v1140
  %v1142 = vtanh.pop %v1128
  %v1143 = vxor.u32 %v1129, 2147483648
  %v1144 = vmul.f32 %v1143, 1.442695
  %v1145 = vpow.pop %v1144
  %v1146 = vadd.f32 %v1145, 1.0
  %v1147 = vrcp.pop %v1146
  %v1148 = vmul.f32 1.0, %v1147
  %v1149 = vmul.f32 %v1141, %v972
  %v1150 = vmul.f32 %v1135, %v1142
  %v1151 = vadd.f32 %v1149, %v1150
  %v1152 = vtanh.pop %v1151
  %v1153 = vmul.f32 %v1148, %v1152
  %s1154 = scalar_lea.vmem %s4, 24
  %1155 = vst [vmem:[%s1154] sm:$0xff] %v1153
  %s1156 = smul.u32 4, 4
  %s1157 = smul.addr %s1156, 8
  %s1158 = scalar_lea.vmem [#allocation2], %s1157
  %v1159 = vld [vmem:[%s1158] sm:$0xff]
  %v1160 = vld [vmem:[%s1158 + $0x8] sm:$0xff]
  %v1161 = vld [vmem:[%s1158 + $0x10] sm:$0xff]
  %v1162 = vld [vmem:[%s1158 + $0x18] sm:$0xff]
  %1163 = vmatprep.subr.mxu0 %v376
  %1164 = vmatpush1.msra.mxu0 %v375
  %1165 = vmatprep.subr.mxu0 %v380
  %1166 = vmatpush1.msra.mxu0 %v379
  %1167 = vmatprep.subr.mxu0 %v384
  %1168 = vmatpush1.msra.mxu0 %v383
  %1169 = vmatprep.subr.mxu0 %v388
  %1170 = vmatpush1.msra.mxu0 %v387
  %1171 = vmatprep.subr.mxu0 %v392
  %1172 = vmatpush1.msra.mxu0 %v391
  %1173 = vmatprep.subr.mxu0 %v396
  %1174 = vmatpush1.msra.mxu0 %v395
  %1175 = vmatprep.subr.mxu0 %v400
  %1176 = vmatpush1.msra.mxu0 %v399
  %1177 = vmatprep.subr.mxu0 %v404
  %1178 = vmatpush1.msra.mxu0 %v403
  %1179 = vmatprep.subr.mxu0 %v408
  %1180 = vmatpush1.msra.mxu0 %v407
  %1181 = vmatprep.subr.mxu0 %v412
  %1182 = vmatpush1.msra.mxu0 %v411
  %1183 = vmatprep.subr.mxu0 %v416
  %1184 = vmatpush1.msra.mxu0 %v415
  %1185 = vmatprep.subr.mxu0 %v420
  %1186 = vmatpush1.msra.mxu0 %v419
  %1187 = vmatprep.subr.mxu0 %v424
  %1188 = vmatpush1.msra.mxu0 %v423
  %1189 = vmatprep.subr.mxu0 %v428
  %1190 = vmatpush1.msra.mxu0 %v427
  %1191 = vmatprep.subr.mxu0 %v432
  %1192 = vmatpush1.msra.mxu0 %v431
  %1193 = vmatprep.subr.mxu0 %v436
  %1194 = vmatpush1.msra.mxu0 %v435
  %1195 = vmatprep.subr.mxu0 0.0
  %1196 = vmatpush1.msra.mxu0 0.0
  %1197 = vmatprep.subr.mxu0 0.0
  %1198 = vmatpush1.msra.mxu0 0.0
  %1199 = vmatprep.subr.mxu0 0.0
  %1200 = vmatpush1.msra.mxu0 0.0
  %1201 = vmatprep.subr.mxu0 0.0
  %1202 = vmatpush1.msra.mxu0 0.0
  %1203 = vmatprep.subr.mxu0 0.0
  %1204 = vmatpush1.msra.mxu0 0.0
  %1205 = vmatprep.subr.mxu0 0.0
  %1206 = vmatpush1.msra.mxu0 0.0
  %1207 = vmatprep.subr.mxu0 0.0
  %1208 = vmatpush1.msra.mxu0 0.0
  %1209 = vmatprep.subr.mxu0 0.0
  %1210 = vmatpush1.msra.mxu0 0.0
  %1211 = vmatprep.subr.mxu0 0.0
  %1212 = vmatpush1.msra.mxu0 0.0
  %1213 = vmatprep.subr.mxu0 0.0
  %1214 = vmatpush1.msra.mxu0 0.0
  %1215 = vmatprep.subr.mxu0 0.0
  %1216 = vmatpush1.msra.mxu0 0.0
  %1217 = vmatprep.subr.mxu0 0.0
  %1218 = vmatpush1.msra.mxu0 0.0
  %1219 = vmatprep.subr.mxu0 0.0
  %1220 = vmatpush1.msra.mxu0 0.0
  %1221 = vmatprep.subr.mxu0 0.0
  %1222 = vmatpush1.msra.mxu0 0.0
  %1223 = vmatprep.subr.mxu0 0.0
  %1224 = vmatpush1.msra.mxu0 0.0
  %1225 = vmatprep.subr.mxu0 0.0
  %1226 = vmatpush1.msra.mxu0 0.0
  %1227 = vmatprep.mubr.f32.mxu0 0.0
  %1228 = vmatmul.mubr.f32.gmra.mrb[0].mxu0 %v1153
  %v1229 = vpop.f32.mrb[0].mxu0
  %v1230 = vadd.f32 0.0, %v1229
  %v1231 = vpop.f32.mrb[0].mxu0
  %v1232 = vadd.f32 0.0, %v1231
  %1233 = vdwg.mxu0
  %1234 = vmatprep.subr.mxu0 %v378
  %1235 = vmatpush1.msra.mxu0 %v377
  %1236 = vmatprep.subr.mxu0 %v382
  %1237 = vmatpush1.msra.mxu0 %v381
  %1238 = vmatprep.subr.mxu0 %v386
  %1239 = vmatpush1.msra.mxu0 %v385
  %1240 = vmatprep.subr.mxu0 %v390
  %1241 = vmatpush1.msra.mxu0 %v389
  %1242 = vmatprep.subr.mxu0 %v394
  %1243 = vmatpush1.msra.mxu0 %v393
  %1244 = vmatprep.subr.mxu0 %v398
  %1245 = vmatpush1.msra.mxu0 %v397
  %1246 = vmatprep.subr.mxu0 %v402
  %1247 = vmatpush1.msra.mxu0 %v401
  %1248 = vmatprep.subr.mxu0 %v406
  %1249 = vmatpush1.msra.mxu0 %v405
  %1250 = vmatprep.subr.mxu0 %v410
  %1251 = vmatpush1.msra.mxu0 %v409
  %1252 = vmatprep.subr.mxu0 %v414
  %1253 = vmatpush1.msra.mxu0 %v413
  %1254 = vmatprep.subr.mxu0 %v418
  %1255 = vmatpush1.msra.mxu0 %v417
  %1256 = vmatprep.subr.mxu0 %v422
  %1257 = vmatpush1.msra.mxu0 %v421
  %1258 = vmatprep.subr.mxu0 %v426
  %1259 = vmatpush1.msra.mxu0 %v425
  %1260 = vmatprep.subr.mxu0 %v430
  %1261 = vmatpush1.msra.mxu0 %v429
  %1262 = vmatprep.subr.mxu0 %v434
  %1263 = vmatpush1.msra.mxu0 %v433
  %1264 = vmatprep.subr.mxu0 %v438
  %1265 = vmatpush1.msra.mxu0 %v437
  %1266 = vmatprep.subr.mxu0 0.0
  %1267 = vmatpush1.msra.mxu0 0.0
  %1268 = vmatprep.subr.mxu0 0.0
  %1269 = vmatpush1.msra.mxu0 0.0
  %1270 = vmatprep.subr.mxu0 0.0
  %1271 = vmatpush1.msra.mxu0 0.0
  %1272 = vmatprep.subr.mxu0 0.0
  %1273 = vmatpush1.msra.mxu0 0.0
  %1274 = vmatprep.subr.mxu0 0.0
  %1275 = vmatpush1.msra.mxu0 0.0
  %1276 = vmatprep.subr.mxu0 0.0
  %1277 = vmatpush1.msra.mxu0 0.0
  %1278 = vmatprep.subr.mxu0 0.0
  %1279 = vmatpush1.msra.mxu0 0.0
  %1280 = vmatprep.subr.mxu0 0.0
  %1281 = vmatpush1.msra.mxu0 0.0
  %1282 = vmatprep.subr.mxu0 0.0
  %1283 = vmatpush1.msra.mxu0 0.0
  %1284 = vmatprep.subr.mxu0 0.0
  %1285 = vmatpush1.msra.mxu0 0.0
  %1286 = vmatprep.subr.mxu0 0.0
  %1287 = vmatpush1.msra.mxu0 0.0
  %1288 = vmatprep.subr.mxu0 0.0
  %1289 = vmatpush1.msra.mxu0 0.0
  %1290 = vmatprep.subr.mxu0 0.0
  %1291 = vmatpush1.msra.mxu0 0.0
  %1292 = vmatprep.subr.mxu0 0.0
  %1293 = vmatpush1.msra.mxu0 0.0
  %1294 = vmatprep.subr.mxu0 0.0
  %1295 = vmatpush1.msra.mxu0 0.0
  %1296 = vmatprep.subr.mxu0 0.0
  %1297 = vmatpush1.msra.mxu0 0.0
  %1298 = vmatprep.mubr.f32.mxu0 0.0
  %1299 = vmatmul.mubr.f32.gmra.mrb[0].mxu0 %v1153
  %v1300 = vpop.f32.mrb[0].mxu0
  %v1301 = vadd.f32 0.0, %v1300
  %v1302 = vpop.f32.mrb[0].mxu0
  %v1303 = vadd.f32 0.0, %v1302
  %1304 = vdwg.mxu0
  %v1305 = vadd.f32 %v1159, %v1230
  %v1306 = vadd.f32 %v1160, %v1232
  %v1307 = vadd.f32 %v1161, %v1301
  %v1308 = vadd.f32 %v1162, %v1303
  %v1309 = vxor.u32 %v1305, 2147483648
  %v1310 = vmul.f32 %v1309, 1.442695
  %v1311 = vpow.pop %v1310
  %v1312 = vadd.f32 %v1311, 1.0
  %v1313 = vrcp.pop %v1312
  %v1314 = vmul.f32 1.0, %v1313
  %v1315 = vxor.u32 %v1306, 2147483648
  %v1316 = vmul.f32 %v1315, 1.442695
  %v1317 = vpow.pop %v1316
  %v1318 = vadd.f32 %v1317, 1.0
  %v1319 = vrcp.pop %v1318
  %v1320 = vmul.f32 1.0, %v1319
  %v1321 = vtanh.pop %v1307
  %v1322 = vxor.u32 %v1308, 2147483648
  %v1323 = vmul.f32 %v1322, 1.442695
  %v1324 = vpow.pop %v1323
  %v1325 = vadd.f32 %v1324, 1.0
  %v1326 = vrcp.pop %v1325
  %v1327 = vmul.f32 1.0, %v1326
  %v1328 = vmul.f32 %v1320, %v1151
  %v1329 = vmul.f32 %v1314, %v1321
  %v1330 = vadd.f32 %v1328, %v1329
  %v1331 = vtanh.pop %v1330
  %v1332 = vmul.f32 %v1327, %v1331
  %s1333 = scalar_lea.vmem %s4, 32
  %1334 = vst [vmem:[%s1333] sm:$0xff] %v1332
  %s1335 = smul.u32 5, 4
  %s1336 = smul.addr %s1335, 8
  %s1337 = scalar_lea.vmem [#allocation2], %s1336
  %v1338 = vld [vmem:[%s1337] sm:$0xff]
  %v1339 = vld [vmem:[%s1337 + $0x8] sm:$0xff]
  %v1340 = vld [vmem:[%s1337 + $0x10] sm:$0xff]
  %v1341 = vld [vmem:[%s1337 + $0x18] sm:$0xff]
  %1342 = vmatprep.subr.mxu0 %v376
  %1343 = vmatpush1.msra.mxu0 %v375
  %1344 = vmatprep.subr.mxu0 %v380
  %1345 = vmatpush1.msra.mxu0 %v379
  %1346 = vmatprep.subr.mxu0 %v384
  %1347 = vmatpush1.msra.mxu0 %v383
  %1348 = vmatprep.subr.mxu0 %v388
  %1349 = vmatpush1.msra.mxu0 %v387
  %1350 = vmatprep.subr.mxu0 %v392
  %1351 = vmatpush1.msra.mxu0 %v391
  %1352 = vmatprep.subr.mxu0 %v396
  %1353 = vmatpush1.msra.mxu0 %v395
  %1354 = vmatprep.subr.mxu0 %v400
  %1355 = vmatpush1.msra.mxu0 %v399
  %1356 = vmatprep.subr.mxu0 %v404
  %1357 = vmatpush1.msra.mxu0 %v403
  %1358 = vmatprep.subr.mxu0 %v408
  %1359 = vmatpush1.msra.mxu0 %v407
  %1360 = vmatprep.subr.mxu0 %v412
  %1361 = vmatpush1.msra.mxu0 %v411
  %1362 = vmatprep.subr.mxu0 %v416
  %1363 = vmatpush1.msra.mxu0 %v415
  %1364 = vmatprep.subr.mxu0 %v420
  %1365 = vmatpush1.msra.mxu0 %v419
  %1366 = vmatprep.subr.mxu0 %v424
  %1367 = vmatpush1.msra.mxu0 %v423
  %1368 = vmatprep.subr.mxu0 %v428
  %1369 = vmatpush1.msra.mxu0 %v427
  %1370 = vmatprep.subr.mxu0 %v432
  %1371 = vmatpush1.msra.mxu0 %v431
  %1372 = vmatprep.subr.mxu0 %v436
  %1373 = vmatpush1.msra.mxu0 %v435
  %1374 = vmatprep.subr.mxu0 0.0
  %1375 = vmatpush1.msra.mxu0 0.0
  %1376 = vmatprep.subr.mxu0 0.0
  %1377 = vmatpush1.msra.mxu0 0.0
  %1378 = vmatprep.subr.mxu0 0.0
  %1379 = vmatpush1.msra.mxu0 0.0
  %1380 = vmatprep.subr.mxu0 0.0
  %1381 = vmatpush1.msra.mxu0 0.0
  %1382 = vmatprep.subr.mxu0 0.0
  %1383 = vmatpush1.msra.mxu0 0.0
  %1384 = vmatprep.subr.mxu0 0.0
  %1385 = vmatpush1.msra.mxu0 0.0
  %1386 = vmatprep.subr.mxu0 0.0
  %1387 = vmatpush1.msra.mxu0 0.0
  %1388 = vmatprep.subr.mxu0 0.0
  %1389 = vmatpush1.msra.mxu0 0.0
  %1390 = vmatprep.subr.mxu0 0.0
  %1391 = vmatpush1.msra.mxu0 0.0
  %1392 = vmatprep.subr.mxu0 0.0
  %1393 = vmatpush1.msra.mxu0 0.0
  %1394 = vmatprep.subr.mxu0 0.0
  %1395 = vmatpush1.msra.mxu0 0.0
  %1396 = vmatprep.subr.mxu0 0.0
  %1397 = vmatpush1.msra.mxu0 0.0
  %1398 = vmatprep.subr.mxu0 0.0
  %1399 = vmatpush1.msra.mxu0 0.0
  %1400 = vmatprep.subr.mxu0 0.0
  %1401 = vmatpush1.msra.mxu0 0.0
  %1402 = vmatprep.subr.mxu0 0.0
  %1403 = vmatpush1.msra.mxu0 0.0
  %1404 = vmatprep.subr.mxu0 0.0
  %1405 = vmatpush1.msra.mxu0 0.0
  %1406 = vmatprep.mubr.f32.mxu0 0.0
  %1407 = vmatmul.mubr.f32.gmra.mrb[0].mxu0 %v1332
  %v1408 = vpop.f32.mrb[0].mxu0
  %v1409 = vadd.f32 0.0, %v1408
  %v1410 = vpop.f32.mrb[0].mxu0
  %v1411 = vadd.f32 0.0, %v1410
  %1412 = vdwg.mxu0
  %1413 = vmatprep.subr.mxu0 %v378
  %1414 = vmatpush1.msra.mxu0 %v377
  %1415 = vmatprep.subr.mxu0 %v382
  %1416 = vmatpush1.msra.mxu0 %v381
  %1417 = vmatprep.subr.mxu0 %v386
  %1418 = vmatpush1.msra.mxu0 %v385
  %1419 = vmatprep.subr.mxu0 %v390
  %1420 = vmatpush1.msra.mxu0 %v389
  %1421 = vmatprep.subr.mxu0 %v394
  %1422 = vmatpush1.msra.mxu0 %v393
  %1423 = vmatprep.subr.mxu0 %v398
  %1424 = vmatpush1.msra.mxu0 %v397
  %1425 = vmatprep.subr.mxu0 %v402
  %1426 = vmatpush1.msra.mxu0 %v401
  %1427 = vmatprep.subr.mxu0 %v406
  %1428 = vmatpush1.msra.mxu0 %v405
  %1429 = vmatprep.subr.mxu0 %v410
  %1430 = vmatpush1.msra.mxu0 %v409
  %1431 = vmatprep.subr.mxu0 %v414
  %1432 = vmatpush1.msra.mxu0 %v413
  %1433 = vmatprep.subr.mxu0 %v418
  %1434 = vmatpush1.msra.mxu0 %v417
  %1435 = vmatprep.subr.mxu0 %v422
  %1436 = vmatpush1.msra.mxu0 %v421
  %1437 = vmatprep.subr.mxu0 %v426
  %1438 = vmatpush1.msra.mxu0 %v425
  %1439 = vmatprep.subr.mxu0 %v430
  %1440 = vmatpush1.msra.mxu0 %v429
  %1441 = vmatprep.subr.mxu0 %v434
  %1442 = vmatpush1.msra.mxu0 %v433
  %1443 = vmatprep.subr.mxu0 %v438
  %1444 = vmatpush1.msra.mxu0 %v437
  %1445 = vmatprep.subr.mxu0 0.0
  %1446 = vmatpush1.msra.mxu0 0.0
  %1447 = vmatprep.subr.mxu0 0.0
  %1448 = vmatpush1.msra.mxu0 0.0
  %1449 = vmatprep.subr.mxu0 0.0
  %1450 = vmatpush1.msra.mxu0 0.0
  %1451 = vmatprep.subr.mxu0 0.0
  %1452 = vmatpush1.msra.mxu0 0.0
  %1453 = vmatprep.subr.mxu0 0.0
  %1454 = vmatpush1.msra.mxu0 0.0
  %1455 = vmatprep.subr.mxu0 0.0
  %1456 = vmatpush1.msra.mxu0 0.0
  %1457 = vmatprep.subr.mxu0 0.0
  %1458 = vmatpush1.msra.mxu0 0.0
  %1459 = vmatprep.subr.mxu0 0.0
  %1460 = vmatpush1.msra.mxu0 0.0
  %1461 = vmatprep.subr.mxu0 0.0
  %1462 = vmatpush1.msra.mxu0 0.0
  %1463 = vmatprep.subr.mxu0 0.0
  %1464 = vmatpush1.msra.mxu0 0.0
  %1465 = vmatprep.subr.mxu0 0.0
  %1466 = vmatpush1.msra.mxu0 0.0
  %1467 = vmatprep.subr.mxu0 0.0
  %1468 = vmatpush1.msra.mxu0 0.0
  %1469 = vmatprep.subr.mxu0 0.0
  %1470 = vmatpush1.msra.mxu0 0.0
  %1471 = vmatprep.subr.mxu0 0.0
  %1472 = vmatpush1.msra.mxu0 0.0
  %1473 = vmatprep.subr.mxu0 0.0
  %1474 = vmatpush1.msra.mxu0 0.0
  %1475 = vmatprep.subr.mxu0 0.0
  %1476 = vmatpush1.msra.mxu0 0.0
  %1477 = vmatprep.mubr.f32.mxu0 0.0
  %1478 = vmatmul.mubr.f32.gmra.mrb[0].mxu0 %v1332
  %v1479 = vpop.f32.mrb[0].mxu0
  %v1480 = vadd.f32 0.0, %v1479
  %v1481 = vpop.f32.mrb[0].mxu0
  %v1482 = vadd.f32 0.0, %v1481
  %1483 = vdwg.mxu0
  %v1484 = vadd.f32 %v1338, %v1409
  %v1485 = vadd.f32 %v1339, %v1411
  %v1486 = vadd.f32 %v1340, %v1480
  %v1487 = vadd.f32 %v1341, %v1482
  %v1488 = vxor.u32 %v1484, 2147483648
  %v1489 = vmul.f32 %v1488, 1.442695
  %v1490 = vpow.pop %v1489
  %v1491 = vadd.f32 %v1490, 1.0
  %v1492 = vrcp.pop %v1491
  %v1493 = vmul.f32 1.0, %v1492
  %v1494 = vxor.u32 %v1485, 2147483648
  %v1495 = vmul.f32 %v1494, 1.442695
  %v1496 = vpow.pop %v1495
  %v1497 = vadd.f32 %v1496, 1.0
  %v1498 = vrcp.pop %v1497
  %v1499 = vmul.f32 1.0, %v1498
  %v1500 = vtanh.pop %v1486
  %v1501 = vxor.u32 %v1487, 2147483648
  %v1502 = vmul.f32 %v1501, 1.442695
  %v1503 = vpow.pop %v1502
  %v1504 = vadd.f32 %v1503, 1.0
  %v1505 = vrcp.pop %v1504
  %v1506 = vmul.f32 1.0, %v1505
  %v1507 = vmul.f32 %v1499, %v1330
  %v1508 = vmul.f32 %v1493, %v1500
  %v1509 = vadd.f32 %v1507, %v1508
  %v1510 = vtanh.pop %v1509
  %v1511 = vmul.f32 %v1506, %v1510
  %s1512 = scalar_lea.vmem %s4, 40
  %1513 = vst [vmem:[%s1512] sm:$0xff] %v1511
  %s1514 = smul.u32 6, 4
  %s1515 = smul.addr %s1514, 8
  %s1516 = scalar_lea.vmem [#allocation2], %s1515
  %v1517 = vld [vmem:[%s1516] sm:$0xff]
  %v1518 = vld [vmem:[%s1516 + $0x8] sm:$0xff]
  %v1519 = vld [vmem:[%s1516 + $0x10] sm:$0xff]
  %v1520 = vld [vmem:[%s1516 + $0x18] sm:$0xff]
  %1521 = vmatprep.subr.mxu0 %v376
  %1522 = vmatpush1.msra.mxu0 %v375
  %1523 = vmatprep.subr.mxu0 %v380
  %1524 = vmatpush1.msra.mxu0 %v379
  %1525 = vmatprep.subr.mxu0 %v384
  %1526 = vmatpush1.msra.mxu0 %v383
  %1527 = vmatprep.subr.mxu0 %v388
  %1528 = vmatpush1.msra.mxu0 %v387
  %1529 = vmatprep.subr.mxu0 %v392
  %1530 = vmatpush1.msra.mxu0 %v391
  %1531 = vmatprep.subr.mxu0 %v396
  %1532 = vmatpush1.msra.mxu0 %v395
  %1533 = vmatprep.subr.mxu0 %v400
  %1534 = vmatpush1.msra.mxu0 %v399
  %1535 = vmatprep.subr.mxu0 %v404
  %1536 = vmatpush1.msra.mxu0 %v403
  %1537 = vmatprep.subr.mxu0 %v408
  %1538 = vmatpush1.msra.mxu0 %v407
  %1539 = vmatprep.subr.mxu0 %v412
  %1540 = vmatpush1.msra.mxu0 %v411
  %1541 = vmatprep.subr.mxu0 %v416
  %1542 = vmatpush1.msra.mxu0 %v415
  %1543 = vmatprep.subr.mxu0 %v420
  %1544 = vmatpush1.msra.mxu0 %v419
  %1545 = vmatprep.subr.mxu0 %v424
  %1546 = vmatpush1.msra.mxu0 %v423
  %1547 = vmatprep.subr.mxu0 %v428
  %1548 = vmatpush1.msra.mxu0 %v427
  %1549 = vmatprep.subr.mxu0 %v432
  %1550 = vmatpush1.msra.mxu0 %v431
  %1551 = vmatprep.subr.mxu0 %v436
  %1552 = vmatpush1.msra.mxu0 %v435
  %1553 = vmatprep.subr.mxu0 0.0
  %1554 = vmatpush1.msra.mxu0 0.0
  %1555 = vmatprep.subr.mxu0 0.0
  %1556 = vmatpush1.msra.mxu0 0.0
  %1557 = vmatprep.subr.mxu0 0.0
  %1558 = vmatpush1.msra.mxu0 0.0
  %1559 = vmatprep.subr.mxu0 0.0
  %1560 = vmatpush1.msra.mxu0 0.0
  %1561 = vmatprep.subr.mxu0 0.0
  %1562 = vmatpush1.msra.mxu0 0.0
  %1563 = vmatprep.subr.mxu0 0.0
  %1564 = vmatpush1.msra.mxu0 0.0
  %1565 = vmatprep.subr.mxu0 0.0
  %1566 = vmatpush1.msra.mxu0 0.0
  %1567 = vmatprep.subr.mxu0 0.0
  %1568 = vmatpush1.msra.mxu0 0.0
  %1569 = vmatprep.subr.mxu0 0.0
  %1570 = vmatpush1.msra.mxu0 0.0
  %1571 = vmatprep.subr.mxu0 0.0
  %1572 = vmatpush1.msra.mxu0 0.0
  %1573 = vmatprep.subr.mxu0 0.0
  %1574 = vmatpush1.msra.mxu0 0.0
  %1575 = vmatprep.subr.mxu0 0.0
  %1576 = vmatpush1.msra.mxu0 0.0
  %1577 = vmatprep.subr.mxu0 0.0
  %1578 = vmatpush1.msra.mxu0 0.0
  %1579 = vmatprep.subr.mxu0 0.0
  %1580 = vmatpush1.msra.mxu0 0.0
  %1581 = vmatprep.subr.mxu0 0.0
  %1582 = vmatpush1.msra.mxu0 0.0
  %1583 = vmatprep.subr.mxu0 0.0
  %1584 = vmatpush1.msra.mxu0 0.0
  %1585 = vmatprep.mubr.f32.mxu0 0.0
  %1586 = vmatmul.mubr.f32.gmra.mrb[0].mxu0 %v1511
  %v1587 = vpop.f32.mrb[0].mxu0
  %v1588 = vadd.f32 0.0, %v1587
  %v1589 = vpop.f32.mrb[0].mxu0
  %v1590 = vadd.f32 0.0, %v1589
  %1591 = vdwg.mxu0
  %1592 = vmatprep.subr.mxu0 %v378
  %1593 = vmatpush1.msra.mxu0 %v377
  %1594 = vmatprep.subr.mxu0 %v382
  %1595 = vmatpush1.msra.mxu0 %v381
  %1596 = vmatprep.subr.mxu0 %v386
  %1597 = vmatpush1.msra.mxu0 %v385
  %1598 = vmatprep.subr.mxu0 %v390
  %1599 = vmatpush1.msra.mxu0 %v389
  %1600 = vmatprep.subr.mxu0 %v394
  %1601 = vmatpush1.msra.mxu0 %v393
  %1602 = vmatprep.subr.mxu0 %v398
  %1603 = vmatpush1.msra.mxu0 %v397
  %1604 = vmatprep.subr.mxu0 %v402
  %1605 = vmatpush1.msra.mxu0 %v401
  %1606 = vmatprep.subr.mxu0 %v406
  %1607 = vmatpush1.msra.mxu0 %v405
  %1608 = vmatprep.subr.mxu0 %v410
  %1609 = vmatpush1.msra.mxu0 %v409
  %1610 = vmatprep.subr.mxu0 %v414
  %1611 = vmatpush1.msra.mxu0 %v413
  %1612 = vmatprep.subr.mxu0 %v418
  %1613 = vmatpush1.msra.mxu0 %v417
  %1614 = vmatprep.subr.mxu0 %v422
  %1615 = vmatpush1.msra.mxu0 %v421
  %1616 = vmatprep.subr.mxu0 %v426
  %1617 = vmatpush1.msra.mxu0 %v425
  %1618 = vmatprep.subr.mxu0 %v430
  %1619 = vmatpush1.msra.mxu0 %v429
  %1620 = vmatprep.subr.mxu0 %v434
  %1621 = vmatpush1.msra.mxu0 %v433
  %1622 = vmatprep.subr.mxu0 %v438
  %1623 = vmatpush1.msra.mxu0 %v437
  %1624 = vmatprep.subr.mxu0 0.0
  %1625 = vmatpush1.msra.mxu0 0.0
  %1626 = vmatprep.subr.mxu0 0.0
  %1627 = vmatpush1.msra.mxu0 0.0
  %1628 = vmatprep.subr.mxu0 0.0
  %1629 = vmatpush1.msra.mxu0 0.0
  %1630 = vmatprep.subr.mxu0 0.0
  %1631 = vmatpush1.msra.mxu0 0.0
  %1632 = vmatprep.subr.mxu0 0.0
  %1633 = vmatpush1.msra.mxu0 0.0
  %1634 = vmatprep.subr.mxu0 0.0
  %1635 = vmatpush1.msra.mxu0 0.0
  %1636 = vmatprep.subr.mxu0 0.0
  %1637 = vmatpush1.msra.mxu0 0.0
  %1638 = vmatprep.subr.mxu0 0.0
  %1639 = vmatpush1.msra.mxu0 0.0
  %1640 = vmatprep.subr.mxu0 0.0
  %1641 = vmatpush1.msra.mxu0 0.0
  %1642 = vmatprep.subr.mxu0 0.0
  %1643 = vmatpush1.msra.mxu0 0.0
  %1644 = vmatprep.subr.mxu0 0.0
  %1645 = vmatpush1.msra.mxu0 0.0
  %1646 = vmatprep.subr.mxu0 0.0
  %1647 = vmatpush1.msra.mxu0 0.0
  %1648 = vmatprep.subr.mxu0 0.0
  %1649 = vmatpush1.msra.mxu0 0.0
  %1650 = vmatprep.subr.mxu0 0.0
  %1651 = vmatpush1.msra.mxu0 0.0
  %1652 = vmatprep.subr.mxu0 0.0
  %1653 = vmatpush1.msra.mxu0 0.0
  %1654 = vmatprep.subr.mxu0 0.0
  %1655 = vmatpush1.msra.mxu0 0.0
  %1656 = vmatprep.mubr.f32.mxu0 0.0
  %1657 = vmatmul.mubr.f32.gmra.mrb[0].mxu0 %v1511
  %v1658 = vpop.f32.mrb[0].mxu0
  %v1659 = vadd.f32 0.0, %v1658
  %v1660 = vpop.f32.mrb[0].mxu0
  %v1661 = vadd.f32 0.0, %v1660
  %1662 = vdwg.mxu0
  %v1663 = vadd.f32 %v1517, %v1588
  %v1664 = vadd.f32 %v1518, %v1590
  %v1665 = vadd.f32 %v1519, %v1659
  %v1666 = vadd.f32 %v1520, %v1661
  %v1667 = vxor.u32 %v1663, 2147483648
  %v1668 = vmul.f32 %v1667, 1.442695
  %v1669 = vpow.pop %v1668
  %v1670 = vadd.f32 %v1669, 1.0
  %v1671 = vrcp.pop %v1670
  %v1672 = vmul.f32 1.0, %v1671
  %v1673 = vxor.u32 %v1664, 2147483648
  %v1674 = vmul.f32 %v1673, 1.442695
  %v1675 = vpow.pop %v1674
  %v1676 = vadd.f32 %v1675, 1.0
  %v1677 = vrcp.pop %v1676
  %v1678 = vmul.f32 1.0, %v1677
  %v1679 = vtanh.pop %v1665
  %v1680 = vxor.u32 %v1666, 2147483648
  %v1681 = vmul.f32 %v1680, 1.442695
  %v1682 = vpow.pop %v1681
  %v1683 = vadd.f32 %v1682, 1.0
  %v1684 = vrcp.pop %v1683
  %v1685 = vmul.f32 1.0, %v1684
  %v1686 = vmul.f32 %v1678, %v1509
  %v1687 = vmul.f32 %v1672, %v1679
  %v1688 = vadd.f32 %v1686, %v1687
  %v1689 = vtanh.pop %v1688
  %v1690 = vmul.f32 %v1685, %v1689
  %s1691 = scalar_lea.vmem %s4, 48
  %1692 = vst [vmem:[%s1691] sm:$0xff] %v1690
  %s1693 = smul.u32 7, 4
  %s1694 = smul.addr %s1693, 8
  %s1695 = scalar_lea.vmem [#allocation2], %s1694
  %v1696 = vld [vmem:[%s1695] sm:$0xff]
  %v1697 = vld [vmem:[%s1695 + $0x8] sm:$0xff]
  %v1698 = vld [vmem:[%s1695 + $0x10] sm:$0xff]
  %v1699 = vld [vmem:[%s1695 + $0x18] sm:$0xff]
  %1700 = vmatprep.subr.mxu0 %v376
  %1701 = vmatpush1.msra.mxu0 %v375
  %1702 = vmatprep.subr.mxu0 %v380
  %1703 = vmatpush1.msra.mxu0 %v379
  %1704 = vmatprep.subr.mxu0 %v384
  %1705 = vmatpush1.msra.mxu0 %v383
  %1706 = vmatprep.subr.mxu0 %v388
  %1707 = vmatpush1.msra.mxu0 %v387
  %1708 = vmatprep.subr.mxu0 %v392
  %1709 = vmatpush1.msra.mxu0 %v391
  %1710 = vmatprep.subr.mxu0 %v396
  %1711 = vmatpush1.msra.mxu0 %v395
  %1712 = vmatprep.subr.mxu0 %v400
  %1713 = vmatpush1.msra.mxu0 %v399
  %1714 = vmatprep.subr.mxu0 %v404
  %1715 = vmatpush1.msra.mxu0 %v403
  %1716 = vmatprep.subr.mxu0 %v408
  %1717 = vmatpush1.msra.mxu0 %v407
  %1718 = vmatprep.subr.mxu0 %v412
  %1719 = vmatpush1.msra.mxu0 %v411
  %1720 = vmatprep.subr.mxu0 %v416
  %1721 = vmatpush1.msra.mxu0 %v415
  %1722 = vmatprep.subr.mxu0 %v420
  %1723 = vmatpush1.msra.mxu0 %v419
  %1724 = vmatprep.subr.mxu0 %v424
  %1725 = vmatpush1.msra.mxu0 %v423
  %1726 = vmatprep.subr.mxu0 %v428
  %1727 = vmatpush1.msra.mxu0 %v427
  %1728 = vmatprep.subr.mxu0 %v432
  %1729 = vmatpush1.msra.mxu0 %v431
  %1730 = vmatprep.subr.mxu0 %v436
  %1731 = vmatpush1.msra.mxu0 %v435
  %1732 = vmatprep.subr.mxu0 0.0
  %1733 = vmatpush1.msra.mxu0 0.0
  %1734 = vmatprep.subr.mxu0 0.0
  %1735 = vmatpush1.msra.mxu0 0.0
  %1736 = vmatprep.subr.mxu0 0.0
  %1737 = vmatpush1.msra.mxu0 0.0
  %1738 = vmatprep.subr.mxu0 0.0
  %1739 = vmatpush1.msra.mxu0 0.0
  %1740 = vmatprep.subr.mxu0 0.0
  %1741 = vmatpush1.msra.mxu0 0.0
  %1742 = vmatprep.subr.mxu0 0.0
  %1743 = vmatpush1.msra.mxu0 0.0
  %1744 = vmatprep.subr.mxu0 0.0
  %1745 = vmatpush1.msra.mxu0 0.0
  %1746 = vmatprep.subr.mxu0 0.0
  %1747 = vmatpush1.msra.mxu0 0.0
  %1748 = vmatprep.subr.mxu0 0.0
  %1749 = vmatpush1.msra.mxu0 0.0
  %1750 = vmatprep.subr.mxu0 0.0
  %1751 = vmatpush1.msra.mxu0 0.0
  %1752 = vmatprep.subr.mxu0 0.0
  %1753 = vmatpush1.msra.mxu0 0.0
  %1754 = vmatprep.subr.mxu0 0.0
  %1755 = vmatpush1.msra.mxu0 0.0
  %1756 = vmatprep.subr.mxu0 0.0
  %1757 = vmatpush1.msra.mxu0 0.0
  %1758 = vmatprep.subr.mxu0 0.0
  %1759 = vmatpush1.msra.mxu0 0.0
  %1760 = vmatprep.subr.mxu0 0.0
  %1761 = vmatpush1.msra.mxu0 0.0
  %1762 = vmatprep.subr.mxu0 0.0
  %1763 = vmatpush1.msra.mxu0 0.0
  %1764 = vmatprep.mubr.f32.mxu0 0.0
  %1765 = vmatmul.mubr.f32.gmra.mrb[0].mxu0 %v1690
  %v1766 = vpop.f32.mrb[0].mxu0
  %v1767 = vadd.f32 0.0, %v1766
  %v1768 = vpop.f32.mrb[0].mxu0
  %v1769 = vadd.f32 0.0, %v1768
  %1770 = vdwg.mxu0
  %1771 = vmatprep.subr.mxu0 %v378
  %1772 = vmatpush1.msra.mxu0 %v377
  %1773 = vmatprep.subr.mxu0 %v382
  %1774 = vmatpush1.msra.mxu0 %v381
  %1775 = vmatprep.subr.mxu0 %v386
  %1776 = vmatpush1.msra.mxu0 %v385
  %1777 = vmatprep.subr.mxu0 %v390
  %1778 = vmatpush1.msra.mxu0 %v389
  %1779 = vmatprep.subr.mxu0 %v394
  %1780 = vmatpush1.msra.mxu0 %v393
  %1781 = vmatprep.subr.mxu0 %v398
  %1782 = vmatpush1.msra.mxu0 %v397
  %1783 = vmatprep.subr.mxu0 %v402
  %1784 = vmatpush1.msra.mxu0 %v401
  %1785 = vmatprep.subr.mxu0 %v406
  %1786 = vmatpush1.msra.mxu0 %v405
  %1787 = vmatprep.subr.mxu0 %v410
  %1788 = vmatpush1.msra.mxu0 %v409
  %1789 = vmatprep.subr.mxu0 %v414
  %1790 = vmatpush1.msra.mxu0 %v413
  %1791 = vmatprep.subr.mxu0 %v418
  %1792 = vmatpush1.msra.mxu0 %v417
  %1793 = vmatprep.subr.mxu0 %v422
  %1794 = vmatpush1.msra.mxu0 %v421
  %1795 = vmatprep.subr.mxu0 %v426
  %1796 = vmatpush1.msra.mxu0 %v425
  %1797 = vmatprep.subr.mxu0 %v430
  %1798 = vmatpush1.msra.mxu0 %v429
  %1799 = vmatprep.subr.mxu0 %v434
  %1800 = vmatpush1.msra.mxu0 %v433
  %1801 = vmatprep.subr.mxu0 %v438
  %1802 = vmatpush1.msra.mxu0 %v437
  %1803 = vmatprep.subr.mxu0 0.0
  %1804 = vmatpush1.msra.mxu0 0.0
  %1805 = vmatprep.subr.mxu0 0.0
  %1806 = vmatpush1.msra.mxu0 0.0
  %1807 = vmatprep.subr.mxu0 0.0
  %1808 = vmatpush1.msra.mxu0 0.0
  %1809 = vmatprep.subr.mxu0 0.0
  %1810 = vmatpush1.msra.mxu0 0.0
  %1811 = vmatprep.subr.mxu0 0.0
  %1812 = vmatpush1.msra.mxu0 0.0
  %1813 = vmatprep.subr.mxu0 0.0
  %1814 = vmatpush1.msra.mxu0 0.0
  %1815 = vmatprep.subr.mxu0 0.0
  %1816 = vmatpush1.msra.mxu0 0.0
  %1817 = vmatprep.subr.mxu0 0.0
  %1818 = vmatpush1.msra.mxu0 0.0
  %1819 = vmatprep.subr.mxu0 0.0
  %1820 = vmatpush1.msra.mxu0 0.0
  %1821 = vmatprep.subr.mxu0 0.0
  %1822 = vmatpush1.msra.mxu0 0.0
  %1823 = vmatprep.subr.mxu0 0.0
  %1824 = vmatpush1.msra.mxu0 0.0
  %1825 = vmatprep.subr.mxu0 0.0
  %1826 = vmatpush1.msra.mxu0 0.0
  %1827 = vmatprep.subr.mxu0 0.0
  %1828 = vmatpush1.msra.mxu0 0.0
  %1829 = vmatprep.subr.mxu0 0.0
  %1830 = vmatpush1.msra.mxu0 0.0
  %1831 = vmatprep.subr.mxu0 0.0
  %1832 = vmatpush1.msra.mxu0 0.0
  %1833 = vmatprep.subr.mxu0 0.0
  %1834 = vmatpush1.msra.mxu0 0.0
  %1835 = vmatprep.mubr.f32.mxu0 0.0
  %1836 = vmatmul.mubr.f32.gmra.mrb[0].mxu0 %v1690
  %v1837 = vpop.f32.mrb[0].mxu0
  %v1838 = vadd.f32 0.0, %v1837
  %v1839 = vpop.f32.mrb[0].mxu0
  %v1840 = vadd.f32 0.0, %v1839
  %1841 = vdwg.mxu0
  %v1842 = vadd.f32 %v1696, %v1767
  %v1843 = vadd.f32 %v1697, %v1769
  %v1844 = vadd.f32 %v1698, %v1838
  %v1845 = vadd.f32 %v1699, %v1840
  %v1846 = vxor.u32 %v1842, 2147483648
  %v1847 = vmul.f32 %v1846, 1.442695
  %v1848 = vpow.pop %v1847
  %v1849 = vadd.f32 %v1848, 1.0
  %v1850 = vrcp.pop %v1849
  %v1851 = vmul.f32 1.0, %v1850
  %v1852 = vxor.u32 %v1843, 2147483648
  %v1853 = vmul.f32 %v1852, 1.442695
  %v1854 = vpow.pop %v1853
  %v1855 = vadd.f32 %v1854, 1.0
  %v1856 = vrcp.pop %v1855
  %v1857 = vmul.f32 1.0, %v1856
  %v1858 = vtanh.pop %v1844
  %v1859 = vxor.u32 %v1845, 2147483648
  %v1860 = vmul.f32 %v1859, 1.442695
  %v1861 = vpow.pop %v1860
  %v1862 = vadd.f32 %v1861, 1.0
  %v1863 = vrcp.pop %v1862
  %v1864 = vmul.f32 1.0, %v1863
  %v1865 = vmul.f32 %v1857, %v1688
  %v1866 = vmul.f32 %v1851, %v1858
  %v1867 = vadd.f32 %v1865, %v1866
  %v1868 = vtanh.pop %v1867
  %v1869 = vmul.f32 %v1864, %v1868
  %s1870 = scalar_lea.vmem %s4, 56
  %1871 = vst [vmem:[%s1870] sm:$0xff] %v1869
  %1872 = vst [vmem:[#allocation3] sm:$0xff] %v1869
  %1873 = vst [vmem:[#allocation4] sm:$0xff] %v1867
  // Predicated region
  $region22: #{lstm_forward.1} parent=0 // pred_check
    _
  $region23: #{lstm_forward.1} parent=0 // pred_check_branch
    %1875 = sbr.rel (0) target = $region25
  $region24: #{lstm_forward.1} parent=0 // pred_region
    _
  $region25: #{lstm_forward.1} parent=0 // pred_fallthru
    _
  // Predicated region
  $region26: #{lstm_forward.1} parent=0 // pred_check
    _
  $region27: #{lstm_forward.1} parent=0 // pred_check_branch
    %1877 = sbr.rel (0) target = $region29
  $region28: #{lstm_forward.1} parent=0 // pred_region
    _
  $region29: #{lstm_forward.1} parent=0 // pred_fallthru
    _

</llo_original>
